<compile_context>
chip_gen: v7x
topology: tpu7x:2x2x1
jax: 0.10.0
libtpu: 0.0.40
codegen_flags: <defaults>
</compile_context>

<pallas_src>
import functools

import jax
import jax.numpy as jnp
from jax.experimental import pallas as pl
from jax.experimental.pallas import tpu as pltpu  # noqa: F401  (TPU backend import)


# ----------------------------------------------------------------------------- kernels
def _conv_leaky_kernel(w_ref, p_ref, o_ref):
    """Single-step conv-as-GEMM + LeakyReLU(0.2).

    w_ref: (Cout, K) bf16, p_ref: (K, M) bf16, o_ref: (Cout, M) bf16.
    M = N*Ho*Wo sits on the lane axis -> lane-dense stores.
    """
    acc = jnp.dot(w_ref[...], p_ref[...], preferred_element_type=jnp.float32)
    o_ref[...] = jnp.maximum(acc, 0.2 * acc).astype(o_ref.dtype)


def _conv_bn_leaky_kernel(w_ref, p_ref, gamma_ref, beta_ref, o_ref, *, eps):
    """conv-as-GEMM + BatchNorm2d (training batch stats, biased variance)
    + LeakyReLU(0.2), fully fused in a single VMEM-resident step."""
    acc = jnp.dot(w_ref[...], p_ref[...], preferred_element_type=jnp.float32)  # (Cout, M) f32
    m = acc.shape[1]
    inv_m = 1.0 / m
    mean = jnp.sum(acc, axis=1, keepdims=True) * inv_m                  # (Cout, 1)
    centered = acc - mean
    var = jnp.sum(centered * centered, axis=1, keepdims=True) * inv_m   # biased, two-pass
    scale = gamma_ref[...] * jax.lax.rsqrt(var + eps)                   # (Cout, 1) f32
    y = centered * scale + beta_ref[...]
    o_ref[...] = jnp.maximum(y, 0.2 * y).astype(o_ref.dtype)


# ----------------------------------------------------------------------------- glue
def _im2col_cm(x, k, stride, pad):
    """Channel-major im2col.

    x: (C, N, H, W) -> patches (K, M) with K in (kh, kw, c) order and
    M = N*Ho*Wo in (n, ho, wo) order.  Pure slicing + stack, no transposes.
    """
    c, n, h, w = x.shape
    xp = jnp.pad(x, ((0, 0), (0, 0), (pad, pad), (pad, pad)))
    ho = (h + 2 * pad - k) // stride + 1
    wo = (w + 2 * pad - k) // stride + 1
    taps = []
    for i in range(k):
        for j in range(k):
            taps.append(xp[:, :, i:i + stride * ho:stride, j:j + stride * wo:stride])
    p = jnp.stack(taps, axis=0)                       # (k*k, C, N, Ho, Wo)
    return p.reshape(k * k * c, n * ho * wo), ho, wo  # (K, M)


def _w_as_mat(w, dtype=jnp.bfloat16):
    """PyTorch weight (Cout, Cin, Kh, Kw) -> (Cout, K) with K in (kh, kw, cin)
    order, matching _im2col_cm's column order."""
    cout, cin, kh, kw = w.shape
    return w.transpose(0, 2, 3, 1).reshape(cout, kh * kw * cin).astype(dtype)


def _start_block(x_cm, w):
    # Conv2d(nc, nfc[64], 4, 2, 1, bias=False) -> LeakyReLU(0.2) -> Dropout2d(0.0) (=identity)
    n = x_cm.shape[1]
    cout = w.shape[0]
    patches, ho, wo = _im2col_cm(x_cm, 4, 2, 1)
    y = pl.pallas_call(
        _conv_leaky_kernel,
        out_shape=jax.ShapeDtypeStruct((cout, patches.shape[1]), jnp.bfloat16),
    )(_w_as_mat(w), patches.astype(jnp.bfloat16))
    return y.reshape(cout, n, ho, wo)


def _down_block(x_cm, w, gamma, beta, eps=1e-5):
    # Conv2d(.., 4, 2, 1, bias=False) -> BatchNorm2d (training stats) -> LeakyReLU(0.2)
    # -> Dropout2d(0.0) (=identity), all fused into one kernel.
    n = x_cm.shape[1]
    cout = w.shape[0]
    patches, ho, wo = _im2col_cm(x_cm, 4, 2, 1)
    y = pl.pallas_call(
        functools.partial(_conv_bn_leaky_kernel, eps=eps),
        out_shape=jax.ShapeDtypeStruct((cout, patches.shape[1]), jnp.bfloat16),
    )(
        _w_as_mat(w),
        patches.astype(jnp.bfloat16),
        gamma.reshape(cout, 1).astype(jnp.float32),
        beta.reshape(cout, 1).astype(jnp.float32),
    )
    return y.reshape(cout, n, ho, wo)


def _rf_main(x_cm, w):
    # Conv2d(nfc[8], 1, 4, 1, 0, bias=False) -> Sigmoid.
    # Only N*Ho*Wo = 2 outputs: plain XLA dot + sigmoid (per perf review, a Pallas
    # launch here is pure overhead).
    n = x_cm.shape[1]
    patches, ho, wo = _im2col_cm(x_cm, 4, 1, 0)                 # (K, N*ho*wo)
    w_mat = _w_as_mat(w, dtype=jnp.float32)                     # (1, K)
    y = jax.nn.sigmoid(
        jnp.dot(w_mat, patches.astype(jnp.float32),
                preferred_element_type=jnp.float32))            # (1, M)
    return y.reshape(1, n, ho, wo).transpose(1, 0, 2, 3)        # NCHW (N, 1, ho, wo)


# ----------------------------------------------------------------------------- model
NFC_BASE = {4: 32, 8: 32, 16: 16, 32: 16, 64: 8, 128: 4, 256: 2, 512: 1}


def init_discriminator_params(key, config):
    nc, ndf = config["nc"], config["ndf"]
    nfc = {k: int(v * ndf) for k, v in NFC_BASE.items()}
    ks = jax.random.split(key, 8)

    def conv_w(k, cout, cin):
        return (0.02 * jax.random.normal(k, (cout, cin, 4, 4))).astype(jnp.float32)

    def bn(k, c):
        gamma = (1.0 + 0.02 * jax.random.normal(k, (c,))).astype(jnp.float32)
        beta = jnp.zeros((c,), jnp.float32)
        return gamma, beta

    params = {
        "w_start": conv_w(ks[0], nfc[64], nc),
        "w_32": conv_w(ks[1], nfc[32], nfc[64]),
        "bn_32": bn(ks[2], nfc[32]),
        "w_16": conv_w(ks[3], nfc[16], nfc[32]),
        "bn_16": bn(ks[4], nfc[16]),
        "w_8": conv_w(ks[5], nfc[8], nfc[16]),
        "bn_8": bn(ks[6], nfc[8]),
        "w_rf": conv_w(ks[7], 1, nfc[8]),
    }
    return params


def discriminator_forward(params, image):
    # TODO(synk): Dropout2d is identity here because d_dropout=0.0; stochastic channel
    # dropout (p > 0, training mode) is not implemented.
    # Internal layout is channel-major (C, N, H, W); convert once at the NCHW boundary.
    x = jnp.transpose(image, (1, 0, 2, 3)).astype(jnp.bfloat16)
    x = _start_block(x, params["w_start"])
    x = _down_block(x, params["w_32"], *params["bn_32"])
    x = _down_block(x, params["w_16"], *params["bn_16"])
    x = _down_block(x, params["w_8"], *params["bn_8"])
    return _rf_main(x, params["w_rf"])


# ----------------------------------------------------------------------------- main
if __name__ == "__main__":
    config = {"nc": 3, "ndf": 2, "d_dropout": 0.0}

    key = jax.random.PRNGKey(0)
    k_img, k_params = jax.random.split(key)

    # batch=2, nc=3, 64x64 input -> output (2, 1, 1, 1)
    image = jax.random.normal(k_img, (2, config["nc"], 64, 64), dtype=jnp.float32)
    params = init_discriminator_params(k_params, config)

    fwd = jax.jit(discriminator_forward)
    rf = fwd(params, image)
    jax.block_until_ready(rf)

    assert rf.shape == (2, 1, 1, 1), rf.shape
    assert bool(jnp.all((rf >= 0.0) & (rf <= 1.0)))
    print("KERNEL_OK")
</pallas_src>

<mosaic_0001>
module attributes {stable_mosaic.version = 11 : i64} {
  func.func @_conv_leaky_kernel(%arg0: memref<16x48xbf16, #tpu.memory_space<vmem>>, %arg1: memref<48x2048xbf16, #tpu.memory_space<vmem>>, %arg2: memref<16x2048xbf16, #tpu.memory_space<vmem>>) attributes {dimension_semantics = [], scalar_prefetch = 0 : i64, scratch_operands = 0 : i64, tpu.core_type = #tpu.core_type<tc>} {
    %c0 = arith.constant 0 : index
    %c0_0 = arith.constant 0 : index
    %0 = vector.load %arg0[%c0, %c0_0] : memref<16x48xbf16, #tpu.memory_space<vmem>>, vector<16x48xbf16>
    %c0_1 = arith.constant 0 : index
    %c0_2 = arith.constant 0 : index
    %1 = vector.load %arg1[%c0_1, %c0_2] : memref<48x2048xbf16, #tpu.memory_space<vmem>>, vector<48x2048xbf16>
    %cst = arith.constant dense<0.000000e+00> : vector<16x2048xf32>
    %2 = tpu.matmul %0, %1, %cst {dimension_numbers = #tpu.dot_dimension_numbers<[1], [0], [0], [1], [0, 0, 1, 1], [], []>} : vector<16x48xbf16>, vector<48x2048xbf16>, vector<16x2048xf32> -> vector<16x2048xf32>
    %cst_3 = arith.constant 2.000000e-01 : f32
    %3 = vector.broadcast %cst_3 : f32 to vector<16x2048xf32>
    %4 = arith.mulf %3, %2 : vector<16x2048xf32>
    %5 = arith.maximumf %2, %4 : vector<16x2048xf32>
    %6 = arith.truncf %5 : vector<16x2048xf32> to vector<16x2048xbf16>
    %c0_4 = arith.constant 0 : index
    %c0_5 = arith.constant 0 : index
    %7 = vector.load %arg2[%c0_4, %c0_5] : memref<16x2048xbf16, #tpu.memory_space<vmem>>, vector<16x2048xbf16>
    tpu.vector_store %arg2[%c0_4, %c0_5], %6 {strides = array<i32>} : memref<16x2048xbf16, #tpu.memory_space<vmem>>, vector<16x2048xbf16>,
    return
  }
}

module attributes {stable_mosaic.version = 11 : i64} {
  func.func @_conv_bn_leaky_kernel(%arg0: memref<32x256xbf16, #tpu.memory_space<vmem>>, %arg1: memref<256x512xbf16, #tpu.memory_space<vmem>>, %arg2: memref<32x1xf32, #tpu.memory_space<vmem>>, %arg3: memref<32x1xf32, #tpu.memory_space<vmem>>, %arg4: memref<32x512xbf16, #tpu.memory_space<vmem>>) attributes {dimension_semantics = [], scalar_prefetch = 0 : i64, scratch_operands = 0 : i64, tpu.core_type = #tpu.core_type<tc>} {
    %c0 = arith.constant 0 : index
    %c0_0 = arith.constant 0 : index
    %0 = vector.load %arg0[%c0, %c0_0] : memref<32x256xbf16, #tpu.memory_space<vmem>>, vector<32x256xbf16>
    %c0_1 = arith.constant 0 : index
    %c0_2 = arith.constant 0 : index
    %1 = vector.load %arg1[%c0_1, %c0_2] : memref<256x512xbf16, #tpu.memory_space<vmem>>, vector<256x512xbf16>
    %cst = arith.constant dense<0.000000e+00> : vector<32x512xf32>
    %2 = tpu.matmul %0, %1, %cst {dimension_numbers = #tpu.dot_dimension_numbers<[1], [0], [0], [1], [0, 0, 1, 1], [], []>} : vector<32x256xbf16>, vector<256x512xbf16>, vector<32x512xf32> -> vector<32x512xf32>
    %cst_3 = arith.constant dense<0.000000e+00> : vector<32xf32>
    %3 = vector.multi_reduction <add>, %2, %cst_3 [1] : vector<32x512xf32> to vector<32xf32>
    %4 = vector.shape_cast %3 : vector<32xf32> to vector<32x1xf32>
    %cst_4 = arith.constant 0.001953125 : f32
    %5 = vector.broadcast %cst_4 : f32 to vector<32x1xf32>
    %6 = arith.mulf %4, %5 : vector<32x1xf32>
    %7 = vector.broadcast %6 : vector<32x1xf32> to vector<32x512xf32>
    %8 = arith.subf %2, %7 : vector<32x512xf32>
    %9 = arith.mulf %8, %8 : vector<32x512xf32>
    %cst_5 = arith.constant dense<0.000000e+00> : vector<32xf32>
    %10 = vector.multi_reduction <add>, %9, %cst_5 [1] : vector<32x512xf32> to vector<32xf32>
    %11 = vector.shape_cast %10 : vector<32xf32> to vector<32x1xf32>
    %cst_6 = arith.constant 0.001953125 : f32
    %12 = vector.broadcast %cst_6 : f32 to vector<32x1xf32>
    %13 = arith.mulf %11, %12 : vector<32x1xf32>
    %c0_7 = arith.constant 0 : index
    %c0_8 = arith.constant 0 : index
    %14 = vector.load %arg2[%c0_7, %c0_8] : memref<32x1xf32, #tpu.memory_space<vmem>>, vector<32x1xf32>
    %cst_9 = arith.constant 9.99999974E-6 : f32
    %15 = vector.broadcast %cst_9 : f32 to vector<32x1xf32>
    %16 = arith.addf %13, %15 : vector<32x1xf32>
    %17 = math.rsqrt %16 : vector<32x1xf32>
    %18 = arith.mulf %14, %17 : vector<32x1xf32>
    %19 = vector.broadcast %18 : vector<32x1xf32> to vector<32x512xf32>
    %20 = arith.mulf %8, %19 : vector<32x512xf32>
    %c0_10 = arith.constant 0 : index
    %c0_11 = arith.constant 0 : index
    %21 = vector.load %arg3[%c0_10, %c0_11] : memref<32x1xf32, #tpu.memory_space<vmem>>, vector<32x1xf32>
    %22 = vector.broadcast %21 : vector<32x1xf32> to vector<32x512xf32>
    %23 = arith.addf %20, %22 : vector<32x512xf32>
    %cst_12 = arith.constant 2.000000e-01 : f32
    %24 = vector.broadcast %cst_12 : f32 to vector<32x512xf32>
    %25 = arith.mulf %24, %23 : vector<32x512xf32>
    %26 = arith.maximumf %23, %25 : vector<32x512xf32>
    %27 = arith.truncf %26 : vector<32x512xf32> to vector<32x512xbf16>
    %c0_13 = arith.constant 0 : index
    %c0_14 = arith.constant 0 : index
    %28 = vector.load %arg4[%c0_13, %c0_14] : memref<32x512xbf16, #tpu.memory_space<vmem>>, vector<32x512xbf16>
    tpu.vector_store %arg4[%c0_13, %c0_14], %27 {strides = array<i32>} : memref<32x512xbf16, #tpu.memory_space<vmem>>, vector<32x512xbf16>,
    return
  }
}

module attributes {stable_mosaic.version = 11 : i64} {
  func.func @_conv_bn_leaky_kernel(%arg0: memref<32x512xbf16, #tpu.memory_space<vmem>>, %arg1: memref<512x128xbf16, #tpu.memory_space<vmem>>, %arg2: memref<32x1xf32, #tpu.memory_space<vmem>>, %arg3: memref<32x1xf32, #tpu.memory_space<vmem>>, %arg4: memref<32x128xbf16, #tpu.memory_space<vmem>>) attributes {dimension_semantics = [], scalar_prefetch = 0 : i64, scratch_operands = 0 : i64, tpu.core_type = #tpu.core_type<tc>} {
    %c0 = arith.constant 0 : index
    %c0_0 = arith.constant 0 : index
    %0 = vector.load %arg0[%c0, %c0_0] : memref<32x512xbf16, #tpu.memory_space<vmem>>, vector<32x512xbf16>
    %c0_1 = arith.constant 0 : index
    %c0_2 = arith.constant 0 : index
    %1 = vector.load %arg1[%c0_1, %c0_2] : memref<512x128xbf16, #tpu.memory_space<vmem>>, vector<512x128xbf16>
    %cst = arith.constant dense<0.000000e+00> : vector<32x128xf32>
    %2 = tpu.matmul %0, %1, %cst {dimension_numbers = #tpu.dot_dimension_numbers<[1], [0], [0], [1], [0, 0, 1, 1], [], []>} : vector<32x512xbf16>, vector<512x128xbf16>, vector<32x128xf32> -> vector<32x128xf32>
    %cst_3 = arith.constant dense<0.000000e+00> : vector<32xf32>
    %3 = vector.multi_reduction <add>, %2, %cst_3 [1] : vector<32x128xf32> to vector<32xf32>
    %4 = vector.shape_cast %3 : vector<32xf32> to vector<32x1xf32>
    %cst_4 = arith.constant 7.812500e-03 : f32
    %5 = vector.broadcast %cst_4 : f32 to vector<32x1xf32>
    %6 = arith.mulf %4, %5 : vector<32x1xf32>
    %7 = vector.broadcast %6 : vector<32x1xf32> to vector<32x128xf32>
    %8 = arith.subf %2, %7 : vector<32x128xf32>
    %9 = arith.mulf %8, %8 : vector<32x128xf32>
    %cst_5 = arith.constant dense<0.000000e+00> : vector<32xf32>
    %10 = vector.multi_reduction <add>, %9, %cst_5 [1] : vector<32x128xf32> to vector<32xf32>
    %11 = vector.shape_cast %10 : vector<32xf32> to vector<32x1xf32>
    %cst_6 = arith.constant 7.812500e-03 : f32
    %12 = vector.broadcast %cst_6 : f32 to vector<32x1xf32>
    %13 = arith.mulf %11, %12 : vector<32x1xf32>
    %c0_7 = arith.constant 0 : index
    %c0_8 = arith.constant 0 : index
    %14 = vector.load %arg2[%c0_7, %c0_8] : memref<32x1xf32, #tpu.memory_space<vmem>>, vector<32x1xf32>
    %cst_9 = arith.constant 9.99999974E-6 : f32
    %15 = vector.broadcast %cst_9 : f32 to vector<32x1xf32>
    %16 = arith.addf %13, %15 : vector<32x1xf32>
    %17 = math.rsqrt %16 : vector<32x1xf32>
    %18 = arith.mulf %14, %17 : vector<32x1xf32>
    %19 = vector.broadcast %18 : vector<32x1xf32> to vector<32x128xf32>
    %20 = arith.mulf %8, %19 : vector<32x128xf32>
    %c0_10 = arith.constant 0 : index
    %c0_11 = arith.constant 0 : index
    %21 = vector.load %arg3[%c0_10, %c0_11] : memref<32x1xf32, #tpu.memory_space<vmem>>, vector<32x1xf32>
    %22 = vector.broadcast %21 : vector<32x1xf32> to vector<32x128xf32>
    %23 = arith.addf %20, %22 : vector<32x128xf32>
    %cst_12 = arith.constant 2.000000e-01 : f32
    %24 = vector.broadcast %cst_12 : f32 to vector<32x128xf32>
    %25 = arith.mulf %24, %23 : vector<32x128xf32>
    %26 = arith.maximumf %23, %25 : vector<32x128xf32>
    %27 = arith.truncf %26 : vector<32x128xf32> to vector<32x128xbf16>
    %c0_13 = arith.constant 0 : index
    %c0_14 = arith.constant 0 : index
    %28 = vector.load %arg4[%c0_13, %c0_14] : memref<32x128xbf16, #tpu.memory_space<vmem>>, vector<32x128xbf16>
    tpu.vector_store %arg4[%c0_13, %c0_14], %27 {strides = array<i32>} : memref<32x128xbf16, #tpu.memory_space<vmem>>, vector<32x128xbf16>,
    return
  }
}

module attributes {stable_mosaic.version = 11 : i64} {
  func.func @_conv_bn_leaky_kernel(%arg0: memref<64x512xbf16, #tpu.memory_space<vmem>>, %arg1: memref<512x32xbf16, #tpu.memory_space<vmem>>, %arg2: memref<64x1xf32, #tpu.memory_space<vmem>>, %arg3: memref<64x1xf32, #tpu.memory_space<vmem>>, %arg4: memref<64x32xbf16, #tpu.memory_space<vmem>>) attributes {dimension_semantics = [], scalar_prefetch = 0 : i64, scratch_operands = 0 : i64, tpu.core_type = #tpu.core_type<tc>} {
    %c0 = arith.constant 0 : index
    %c0_0 = arith.constant 0 : index
    %0 = vector.load %arg0[%c0, %c0_0] : memref<64x512xbf16, #tpu.memory_space<vmem>>, vector<64x512xbf16>
    %c0_1 = arith.constant 0 : index
    %c0_2 = arith.constant 0 : index
    %1 = vector.load %arg1[%c0_1, %c0_2] : memref<512x32xbf16, #tpu.memory_space<vmem>>, vector<512x32xbf16>
    %cst = arith.constant dense<0.000000e+00> : vector<64x32xf32>
    %2 = tpu.matmul %0, %1, %cst {dimension_numbers = #tpu.dot_dimension_numbers<[1], [0], [0], [1], [0, 0, 1, 1], [], []>} : vector<64x512xbf16>, vector<512x32xbf16>, vector<64x32xf32> -> vector<64x32xf32>
    %cst_3 = arith.constant dense<0.000000e+00> : vector<64xf32>
    %3 = vector.multi_reduction <add>, %2, %cst_3 [1] : vector<64x32xf32> to vector<64xf32>
    %4 = vector.shape_cast %3 : vector<64xf32> to vector<64x1xf32>
    %cst_4 = arith.constant 3.125000e-02 : f32
    %5 = vector.broadcast %cst_4 : f32 to vector<64x1xf32>
    %6 = arith.mulf %4, %5 : vector<64x1xf32>
    %7 = vector.broadcast %6 : vector<64x1xf32> to vector<64x32xf32>
    %8 = arith.subf %2, %7 : vector<64x32xf32>
    %9 = arith.mulf %8, %8 : vector<64x32xf32>
    %cst_5 = arith.constant dense<0.000000e+00> : vector<64xf32>
    %10 = vector.multi_reduction <add>, %9, %cst_5 [1] : vector<64x32xf32> to vector<64xf32>
    %11 = vector.shape_cast %10 : vector<64xf32> to vector<64x1xf32>
    %cst_6 = arith.constant 3.125000e-02 : f32
    %12 = vector.broadcast %cst_6 : f32 to vector<64x1xf32>
    %13 = arith.mulf %11, %12 : vector<64x1xf32>
    %c0_7 = arith.constant 0 : index
    %c0_8 = arith.constant 0 : index
    %14 = vector.load %arg2[%c0_7, %c0_8] : memref<64x1xf32, #tpu.memory_space<vmem>>, vector<64x1xf32>
    %cst_9 = arith.constant 9.99999974E-6 : f32
    %15 = vector.broadcast %cst_9 : f32 to vector<64x1xf32>
    %16 = arith.addf %13, %15 : vector<64x1xf32>
    %17 = math.rsqrt %16 : vector<64x1xf32>
    %18 = arith.mulf %14, %17 : vector<64x1xf32>
    %19 = vector.broadcast %18 : vector<64x1xf32> to vector<64x32xf32>
    %20 = arith.mulf %8, %19 : vector<64x32xf32>
    %c0_10 = arith.constant 0 : index
    %c0_11 = arith.constant 0 : index
    %21 = vector.load %arg3[%c0_10, %c0_11] : memref<64x1xf32, #tpu.memory_space<vmem>>, vector<64x1xf32>
    %22 = vector.broadcast %21 : vector<64x1xf32> to vector<64x32xf32>
    %23 = arith.addf %20, %22 : vector<64x32xf32>
    %cst_12 = arith.constant 2.000000e-01 : f32
    %24 = vector.broadcast %cst_12 : f32 to vector<64x32xf32>
    %25 = arith.mulf %24, %23 : vector<64x32xf32>
    %26 = arith.maximumf %23, %25 : vector<64x32xf32>
    %27 = arith.truncf %26 : vector<64x32xf32> to vector<64x32xbf16>
    %c0_13 = arith.constant 0 : index
    %c0_14 = arith.constant 0 : index
    %28 = vector.load %arg4[%c0_13, %c0_14] : memref<64x32xbf16, #tpu.memory_space<vmem>>, vector<64x32xbf16>
    tpu.vector_store %arg4[%c0_13, %c0_14], %27 {strides = array<i32>} : memref<64x32xbf16, #tpu.memory_space<vmem>>, vector<64x32xbf16>,
    return
  }
}

</mosaic_0001>

<llo_original>
// kernel: discriminator_forward.4
$region0: #{discriminator_forward.4}
  #allocation0 [shape = 'u32[]', space=smem, size = 0x4, offset = 0x4, fixed_abs, tag = 'smem constant byte address 0x4 - core index']
  #allocation1 [shape = 'u32[144,128]{1,0:T(1,128)}', space=vmem, size = 0x12000, scoped, tag = 'internal scratch']
  %s0 = inlined_call_operand.vmem [shape: bf16[16,48], index: 0, kind: input, shape index: {}]
  %s1 = inlined_call_operand.vmem [shape: bf16[48,2048], index: 1, kind: input, shape index: {}]
  %s2 = inlined_call_operand.vmem [shape: bf16[16,2048], index: 2, kind: output, shape index: {}]
  %s3 = sld [smem:[#allocation0]]
  $region18: #{discriminator_forward.4} parent=0
    _
  %s5 = ssub.s32 1, %s3
  %s6 = scalar_select 0, %s5, %s3
  // Predicated region
  $region2: #{discriminator_forward.4} parent=0 // pred_check
    _
  $region3: #{discriminator_forward.4} parent=0 // pred_check_branch
    %8 = sbr.rel (0) target = $region5
  $region4: #{discriminator_forward.4} parent=0 // pred_region
    _
  $region5: #{discriminator_forward.4} parent=0 // pred_fallthru
    _
  // Predicated region
  $region6: #{discriminator_forward.4} parent=0 // pred_check
    _
  $region7: #{discriminator_forward.4} parent=0 // pred_check_branch
    %10 = sbr.rel (0) target = $region9
  $region8: #{discriminator_forward.4} parent=0 // pred_region
    _
  $region9: #{discriminator_forward.4} parent=0 // pred_fallthru
    _
  %v12 = vld [vmem:[%s0] sm:$0xf]
  %v13 = vld [vmem:[%s0 + $0x4] sm:$0xf]
  %v14 = vld [vmem:[%s1] sm:$0xff]
  %v15 = vld [vmem:[%s1 + $0x8] sm:$0xff]
  %v16 = vld [vmem:[%s1 + $0x10] sm:$0xff]
  %v17 = vld [vmem:[%s1 + $0x18] sm:$0xff]
  %v18 = vld [vmem:[%s1 + $0x20] sm:$0xff]
  %v19 = vld [vmem:[%s1 + $0x28] sm:$0xff]
  %v20 = vld [vmem:[%s1 + $0x30] sm:$0xff]
  %v21 = vld [vmem:[%s1 + $0x38] sm:$0xff]
  %v22 = vld [vmem:[%s1 + $0x40] sm:$0xff]
  %v23 = vld [vmem:[%s1 + $0x48] sm:$0xff]
  %v24 = vld [vmem:[%s1 + $0x50] sm:$0xff]
  %v25 = vld [vmem:[%s1 + $0x58] sm:$0xff]
  %v26 = vld [vmem:[%s1 + $0x60] sm:$0xff]
  %v27 = vld [vmem:[%s1 + $0x68] sm:$0xff]
  %v28 = vld [vmem:[%s1 + $0x70] sm:$0xff]
  %v29 = vld [vmem:[%s1 + $0x78] sm:$0xff]
  %v30 = vld [vmem:[%s1 + $0x80] sm:$0xff]
  %v31 = vld [vmem:[%s1 + $0x88] sm:$0xff]
  %v32 = vld [vmem:[%s1 + $0x90] sm:$0xff]
  %v33 = vld [vmem:[%s1 + $0x98] sm:$0xff]
  %v34 = vld [vmem:[%s1 + $0xa0] sm:$0xff]
  %v35 = vld [vmem:[%s1 + $0xa8] sm:$0xff]
  %v36 = vld [vmem:[%s1 + $0xb0] sm:$0xff]
  %v37 = vld [vmem:[%s1 + $0xb8] sm:$0xff]
  %v38 = vld [vmem:[%s1 + $0xc0] sm:$0xff]
  %v39 = vld [vmem:[%s1 + $0xc8] sm:$0xff]
  %v40 = vld [vmem:[%s1 + $0xd0] sm:$0xff]
  %v41 = vld [vmem:[%s1 + $0xd8] sm:$0xff]
  %v42 = vld [vmem:[%s1 + $0xe0] sm:$0xff]
  %v43 = vld [vmem:[%s1 + $0xe8] sm:$0xff]
  %v44 = vld [vmem:[%s1 + $0xf0] sm:$0xff]
  %v45 = vld [vmem:[%s1 + $0xf8] sm:$0xff]
  %v46 = vld [vmem:[%s1 + $0x100] sm:$0xff]
  %v47 = vld [vmem:[%s1 + $0x108] sm:$0xff]
  %v48 = vld [vmem:[%s1 + $0x110] sm:$0xff]
  %v49 = vld [vmem:[%s1 + $0x118] sm:$0xff]
  %v50 = vld [vmem:[%s1 + $0x120] sm:$0xff]
  %v51 = vld [vmem:[%s1 + $0x128] sm:$0xff]
  %v52 = vld [vmem:[%s1 + $0x130] sm:$0xff]
  %v53 = vld [vmem:[%s1 + $0x138] sm:$0xff]
  %v54 = vld [vmem:[%s1 + $0x140] sm:$0xff]
  %v55 = vld [vmem:[%s1 + $0x148] sm:$0xff]
  %v56 = vld [vmem:[%s1 + $0x150] sm:$0xff]
  %v57 = vld [vmem:[%s1 + $0x158] sm:$0xff]
  %v58 = vld [vmem:[%s1 + $0x160] sm:$0xff]
  %v59 = vld [vmem:[%s1 + $0x168] sm:$0xff]
  %v60 = vld [vmem:[%s1 + $0x170] sm:$0xff]
  %v61 = vld [vmem:[%s1 + $0x178] sm:$0xff]
  %v64 = vunpack.c.l.b16 %v12
  %v65 = vunpack.c.l.b16 %v13
  %v66 = vpack.c.b16 %v65, %v64
  %v115 = vunpack.c.l.b16 %v14
  %v116 = vunpack.c.h.b16 %v14
  %v117 = vunpack.c.l.b16 %v15
  %v118 = vunpack.c.h.b16 %v15
  %v119 = vunpack.c.l.b16 %v16
  %v120 = vunpack.c.h.b16 %v16
  %v121 = vunpack.c.l.b16 %v17
  %v122 = vunpack.c.h.b16 %v17
  %v123 = vunpack.c.l.b16 %v18
  %v124 = vunpack.c.h.b16 %v18
  %v125 = vunpack.c.l.b16 %v19
  %v126 = vunpack.c.h.b16 %v19
  %v127 = vunpack.c.l.b16 %v20
  %v128 = vunpack.c.h.b16 %v20
  %v129 = vunpack.c.l.b16 %v21
  %v130 = vunpack.c.h.b16 %v21
  %v131 = vunpack.c.l.b16 %v22
  %v132 = vunpack.c.h.b16 %v22
  %v133 = vunpack.c.l.b16 %v23
  %v134 = vunpack.c.h.b16 %v23
  %v135 = vunpack.c.l.b16 %v24
  %v136 = vunpack.c.h.b16 %v24
  %v137 = vunpack.c.l.b16 %v25
  %v138 = vunpack.c.h.b16 %v25
  %v139 = vunpack.c.l.b16 %v26
  %v140 = vunpack.c.h.b16 %v26
  %v141 = vunpack.c.l.b16 %v27
  %v142 = vunpack.c.h.b16 %v27
  %v143 = vunpack.c.l.b16 %v28
  %v144 = vunpack.c.h.b16 %v28
  %v145 = vunpack.c.l.b16 %v29
  %v146 = vunpack.c.h.b16 %v29
  %v147 = vunpack.c.l.b16 %v30
  %v148 = vunpack.c.h.b16 %v30
  %v149 = vunpack.c.l.b16 %v31
  %v150 = vunpack.c.h.b16 %v31
  %v151 = vunpack.c.l.b16 %v32
  %v152 = vunpack.c.h.b16 %v32
  %v153 = vunpack.c.l.b16 %v33
  %v154 = vunpack.c.h.b16 %v33
  %v155 = vunpack.c.l.b16 %v34
  %v156 = vunpack.c.h.b16 %v34
  %v157 = vunpack.c.l.b16 %v35
  %v158 = vunpack.c.h.b16 %v35
  %v159 = vunpack.c.l.b16 %v36
  %v160 = vunpack.c.h.b16 %v36
  %v161 = vunpack.c.l.b16 %v37
  %v162 = vunpack.c.h.b16 %v37
  %v163 = vunpack.c.l.b16 %v38
  %v164 = vunpack.c.h.b16 %v38
  %v165 = vunpack.c.l.b16 %v39
  %v166 = vunpack.c.h.b16 %v39
  %v167 = vunpack.c.l.b16 %v40
  %v168 = vunpack.c.h.b16 %v40
  %v169 = vunpack.c.l.b16 %v41
  %v170 = vunpack.c.h.b16 %v41
  %v171 = vunpack.c.l.b16 %v42
  %v172 = vunpack.c.h.b16 %v42
  %v173 = vunpack.c.l.b16 %v43
  %v174 = vunpack.c.h.b16 %v43
  %v175 = vunpack.c.l.b16 %v44
  %v176 = vunpack.c.h.b16 %v44
  %v177 = vunpack.c.l.b16 %v45
  %v178 = vunpack.c.h.b16 %v45
  %v179 = vunpack.c.l.b16 %v46
  %v180 = vunpack.c.h.b16 %v46
  %v181 = vunpack.c.l.b16 %v47
  %v182 = vunpack.c.h.b16 %v47
  %v183 = vunpack.c.l.b16 %v48
  %v184 = vunpack.c.h.b16 %v48
  %v185 = vunpack.c.l.b16 %v49
  %v186 = vunpack.c.h.b16 %v49
  %v187 = vunpack.c.l.b16 %v50
  %v188 = vunpack.c.h.b16 %v50
  %v189 = vunpack.c.l.b16 %v51
  %v190 = vunpack.c.h.b16 %v51
  %v191 = vunpack.c.l.b16 %v52
  %v192 = vunpack.c.h.b16 %v52
  %v193 = vunpack.c.l.b16 %v53
  %v194 = vunpack.c.h.b16 %v53
  %v195 = vunpack.c.l.b16 %v54
  %v196 = vunpack.c.h.b16 %v54
  %v197 = vunpack.c.l.b16 %v55
  %v198 = vunpack.c.h.b16 %v55
  %v199 = vunpack.c.l.b16 %v56
  %v200 = vunpack.c.h.b16 %v56
  %v201 = vunpack.c.l.b16 %v57
  %v202 = vunpack.c.h.b16 %v57
  %v203 = vunpack.c.l.b16 %v58
  %v204 = vunpack.c.h.b16 %v58
  %v205 = vunpack.c.l.b16 %v59
  %v206 = vunpack.c.h.b16 %v59
  %v207 = vunpack.c.l.b16 %v60
  %v208 = vunpack.c.h.b16 %v60
  %v209 = vunpack.c.l.b16 %v61
  %v210 = vunpack.c.h.b16 %v61
  %v211 = vpack.c.b16 %v131, %v115
  %v212 = vpack.c.b16 %v132, %v116
  %v213 = vpack.c.b16 %v133, %v117
  %v214 = vpack.c.b16 %v134, %v118
  %v215 = vpack.c.b16 %v135, %v119
  %v216 = vpack.c.b16 %v136, %v120
  %v217 = vpack.c.b16 %v137, %v121
  %v218 = vpack.c.b16 %v138, %v122
  %v219 = vpack.c.b16 %v139, %v123
  %v220 = vpack.c.b16 %v140, %v124
  %v221 = vpack.c.b16 %v141, %v125
  %v222 = vpack.c.b16 %v142, %v126
  %v223 = vpack.c.b16 %v143, %v127
  %v224 = vpack.c.b16 %v144, %v128
  %v225 = vpack.c.b16 %v145, %v129
  %v226 = vpack.c.b16 %v146, %v130
  %v227 = vpack.c.b16 %v163, %v147
  %v228 = vpack.c.b16 %v164, %v148
  %v229 = vpack.c.b16 %v165, %v149
  %v230 = vpack.c.b16 %v166, %v150
  %v231 = vpack.c.b16 %v167, %v151
  %v232 = vpack.c.b16 %v168, %v152
  %v233 = vpack.c.b16 %v169, %v153
  %v234 = vpack.c.b16 %v170, %v154
  %v235 = vpack.c.b16 %v171, %v155
  %v236 = vpack.c.b16 %v172, %v156
  %v237 = vpack.c.b16 %v173, %v157
  %v238 = vpack.c.b16 %v174, %v158
  %v239 = vpack.c.b16 %v175, %v159
  %v240 = vpack.c.b16 %v176, %v160
  %v241 = vpack.c.b16 %v177, %v161
  %v242 = vpack.c.b16 %v178, %v162
  %v243 = vpack.c.b16 %v195, %v179
  %v244 = vpack.c.b16 %v196, %v180
  %v245 = vpack.c.b16 %v197, %v181
  %v246 = vpack.c.b16 %v198, %v182
  %v247 = vpack.c.b16 %v199, %v183
  %v248 = vpack.c.b16 %v200, %v184
  %v249 = vpack.c.b16 %v201, %v185
  %v250 = vpack.c.b16 %v202, %v186
  %v251 = vpack.c.b16 %v203, %v187
  %v252 = vpack.c.b16 %v204, %v188
  %v253 = vpack.c.b16 %v205, %v189
  %v254 = vpack.c.b16 %v206, %v190
  %v255 = vpack.c.b16 %v207, %v191
  %v256 = vpack.c.b16 %v208, %v192
  %v257 = vpack.c.b16 %v209, %v193
  %v258 = vpack.c.b16 %v210, %v194
  %vm307 = vcmask 392192
  %v309 = vsel %vm307, %v66, 0
  %311 = vmatprep.subr.bf16.mxu0 %v212
  %312 = vmatpush1.bf16.msra.mxu0 %v211
  %313 = vmatprep.subr.bf16.mxu0 %v228
  %314 = vmatpush1.bf16.msra.mxu0 %v227
  %315 = vmatprep.subr.bf16.mxu0 %v244
  %316 = vmatpush1.bf16.msra.mxu0 %v243
  %317 = vmatprep.subr.bf16.mxu0 0
  %318 = vmatpush1.bf16.msra.mxu0 0
  %319 = vmatprep.subr.bf16.mxu0 0
  %320 = vmatpush1.bf16.msra.mxu0 0
  %321 = vmatprep.subr.bf16.mxu0 0
  %322 = vmatpush1.bf16.msra.mxu0 0
  %323 = vmatprep.subr.bf16.mxu0 0
  %324 = vmatpush1.bf16.msra.mxu0 0
  %325 = vmatprep.subr.bf16.mxu0 0
  %326 = vmatpush1.bf16.msra.mxu0 0
  %327 = vmatprep.subr.bf16.mxu0 0
  %328 = vmatpush1.bf16.msra.mxu0 0
  %329 = vmatprep.subr.bf16.mxu0 0
  %330 = vmatpush1.bf16.msra.mxu0 0
  %331 = vmatprep.subr.bf16.mxu0 0
  %332 = vmatpush1.bf16.msra.mxu0 0
  %333 = vmatprep.subr.bf16.mxu0 0
  %334 = vmatpush1.bf16.msra.mxu0 0
  %335 = vmatprep.subr.bf16.mxu0 0
  %336 = vmatpush1.bf16.msra.mxu0 0
  %337 = vmatprep.subr.bf16.mxu0 0
  %338 = vmatpush1.bf16.msra.mxu0 0
  %339 = vmatprep.subr.bf16.mxu0 0
  %340 = vmatpush1.bf16.msra.mxu0 0
  %341 = vmatprep.subr.bf16.mxu0 0
  %342 = vmatpush1.bf16.msra.mxu0 0
  %343 = vmatprep.mubr.bf16.mxu0 0
  %344 = vmatmul.mubr.bf16.gmra.mrb[0].mxu0 %v309
  %v345 = vpop.f32.mrb[0].mxu0
  %v346 = vadd.f32 0.0, %v345
  %v347 = vpop.f32.mrb[0].mxu0
  %v348 = vadd.f32 0.0, %v347
  %v349 = vpop.f32.mrb[0].mxu0
  %v350 = vadd.f32 0.0, %v349
  %v351 = vpop.f32.mrb[0].mxu0
  %v352 = vadd.f32 0.0, %v351
  %353 = vdwg.mxu0
  %354 = vmatprep.subr.bf16.mxu0 %v214
  %355 = vmatpush1.bf16.msra.mxu0 %v213
  %356 = vmatprep.subr.bf16.mxu0 %v230
  %357 = vmatpush1.bf16.msra.mxu0 %v229
  %358 = vmatprep.subr.bf16.mxu0 %v246
  %359 = vmatpush1.bf16.msra.mxu0 %v245
  %360 = vmatprep.subr.bf16.mxu0 0
  %361 = vmatpush1.bf16.msra.mxu0 0
  %362 = vmatprep.subr.bf16.mxu0 0
  %363 = vmatpush1.bf16.msra.mxu0 0
  %364 = vmatprep.subr.bf16.mxu0 0
  %365 = vmatpush1.bf16.msra.mxu0 0
  %366 = vmatprep.subr.bf16.mxu0 0
  %367 = vmatpush1.bf16.msra.mxu0 0
  %368 = vmatprep.subr.bf16.mxu0 0
  %369 = vmatpush1.bf16.msra.mxu0 0
  %370 = vmatprep.subr.bf16.mxu0 0
  %371 = vmatpush1.bf16.msra.mxu0 0
  %372 = vmatprep.subr.bf16.mxu0 0
  %373 = vmatpush1.bf16.msra.mxu0 0
  %374 = vmatprep.subr.bf16.mxu0 0
  %375 = vmatpush1.bf16.msra.mxu0 0
  %376 = vmatprep.subr.bf16.mxu0 0
  %377 = vmatpush1.bf16.msra.mxu0 0
  %378 = vmatprep.subr.bf16.mxu0 0
  %379 = vmatpush1.bf16.msra.mxu0 0
  %380 = vmatprep.subr.bf16.mxu0 0
  %381 = vmatpush1.bf16.msra.mxu0 0
  %382 = vmatprep.subr.bf16.mxu0 0
  %383 = vmatpush1.bf16.msra.mxu0 0
  %384 = vmatprep.subr.bf16.mxu0 0
  %385 = vmatpush1.bf16.msra.mxu0 0
  %386 = vmatprep.mubr.bf16.mxu0 0
  %387 = vmatmul.mubr.bf16.gmra.mrb[0].mxu0 %v309
  %v388 = vpop.f32.mrb[0].mxu0
  %v389 = vadd.f32 0.0, %v388
  %v390 = vpop.f32.mrb[0].mxu0
  %v391 = vadd.f32 0.0, %v390
  %v392 = vpop.f32.mrb[0].mxu0
  %v393 = vadd.f32 0.0, %v392
  %v394 = vpop.f32.mrb[0].mxu0
  %v395 = vadd.f32 0.0, %v394
  %396 = vdwg.mxu0
  %397 = vmatprep.subr.bf16.mxu0 %v216
  %398 = vmatpush1.bf16.msra.mxu0 %v215
  %399 = vmatprep.subr.bf16.mxu0 %v232
  %400 = vmatpush1.bf16.msra.mxu0 %v231
  %401 = vmatprep.subr.bf16.mxu0 %v248
  %402 = vmatpush1.bf16.msra.mxu0 %v247
  %403 = vmatprep.subr.bf16.mxu0 0
  %404 = vmatpush1.bf16.msra.mxu0 0
  %405 = vmatprep.subr.bf16.mxu0 0
  %406 = vmatpush1.bf16.msra.mxu0 0
  %407 = vmatprep.subr.bf16.mxu0 0
  %408 = vmatpush1.bf16.msra.mxu0 0
  %409 = vmatprep.subr.bf16.mxu0 0
  %410 = vmatpush1.bf16.msra.mxu0 0
  %411 = vmatprep.subr.bf16.mxu0 0
  %412 = vmatpush1.bf16.msra.mxu0 0
  %413 = vmatprep.subr.bf16.mxu0 0
  %414 = vmatpush1.bf16.msra.mxu0 0
  %415 = vmatprep.subr.bf16.mxu0 0
  %416 = vmatpush1.bf16.msra.mxu0 0
  %417 = vmatprep.subr.bf16.mxu0 0
  %418 = vmatpush1.bf16.msra.mxu0 0
  %419 = vmatprep.subr.bf16.mxu0 0
  %420 = vmatpush1.bf16.msra.mxu0 0
  %421 = vmatprep.subr.bf16.mxu0 0
  %422 = vmatpush1.bf16.msra.mxu0 0
  %423 = vmatprep.subr.bf16.mxu0 0
  %424 = vmatpush1.bf16.msra.mxu0 0
  %425 = vmatprep.subr.bf16.mxu0 0
  %426 = vmatpush1.bf16.msra.mxu0 0
  %427 = vmatprep.subr.bf16.mxu0 0
  %428 = vmatpush1.bf16.msra.mxu0 0
  %429 = vmatprep.mubr.bf16.mxu0 0
  %430 = vmatmul.mubr.bf16.gmra.mrb[0].mxu0 %v309
  %v431 = vpop.f32.mrb[0].mxu0
  %v432 = vadd.f32 0.0, %v431
  %v433 = vpop.f32.mrb[0].mxu0
  %v434 = vadd.f32 0.0, %v433
  %v435 = vpop.f32.mrb[0].mxu0
  %v436 = vadd.f32 0.0, %v435
  %v437 = vpop.f32.mrb[0].mxu0
  %v438 = vadd.f32 0.0, %v437
  %439 = vdwg.mxu0
  %440 = vmatprep.subr.bf16.mxu0 %v218
  %441 = vmatpush1.bf16.msra.mxu0 %v217
  %442 = vmatprep.subr.bf16.mxu0 %v234
  %443 = vmatpush1.bf16.msra.mxu0 %v233
  %444 = vmatprep.subr.bf16.mxu0 %v250
  %445 = vmatpush1.bf16.msra.mxu0 %v249
  %446 = vmatprep.subr.bf16.mxu0 0
  %447 = vmatpush1.bf16.msra.mxu0 0
  %448 = vmatprep.subr.bf16.mxu0 0
  %449 = vmatpush1.bf16.msra.mxu0 0
  %450 = vmatprep.subr.bf16.mxu0 0
  %451 = vmatpush1.bf16.msra.mxu0 0
  %452 = vmatprep.subr.bf16.mxu0 0
  %453 = vmatpush1.bf16.msra.mxu0 0
  %454 = vmatprep.subr.bf16.mxu0 0
  %455 = vmatpush1.bf16.msra.mxu0 0
  %456 = vmatprep.subr.bf16.mxu0 0
  %457 = vmatpush1.bf16.msra.mxu0 0
  %458 = vmatprep.subr.bf16.mxu0 0
  %459 = vmatpush1.bf16.msra.mxu0 0
  %460 = vmatprep.subr.bf16.mxu0 0
  %461 = vmatpush1.bf16.msra.mxu0 0
  %462 = vmatprep.subr.bf16.mxu0 0
  %463 = vmatpush1.bf16.msra.mxu0 0
  %464 = vmatprep.subr.bf16.mxu0 0
  %465 = vmatpush1.bf16.msra.mxu0 0
  %466 = vmatprep.subr.bf16.mxu0 0
  %467 = vmatpush1.bf16.msra.mxu0 0
  %468 = vmatprep.subr.bf16.mxu0 0
  %469 = vmatpush1.bf16.msra.mxu0 0
  %470 = vmatprep.subr.bf16.mxu0 0
  %471 = vmatpush1.bf16.msra.mxu0 0
  %472 = vmatprep.mubr.bf16.mxu0 0
  %473 = vmatmul.mubr.bf16.gmra.mrb[0].mxu0 %v309
  %v474 = vpop.f32.mrb[0].mxu0
  %v475 = vadd.f32 0.0, %v474
  %v476 = vpop.f32.mrb[0].mxu0
  %v477 = vadd.f32 0.0, %v476
  %v478 = vpop.f32.mrb[0].mxu0
  %v479 = vadd.f32 0.0, %v478
  %v480 = vpop.f32.mrb[0].mxu0
  %v481 = vadd.f32 0.0, %v480
  %482 = vdwg.mxu0
  %483 = vmatprep.subr.bf16.mxu0 %v220
  %484 = vmatpush1.bf16.msra.mxu0 %v219
  %485 = vmatprep.subr.bf16.mxu0 %v236
  %486 = vmatpush1.bf16.msra.mxu0 %v235
  %487 = vmatprep.subr.bf16.mxu0 %v252
  %488 = vmatpush1.bf16.msra.mxu0 %v251
  %489 = vmatprep.subr.bf16.mxu0 0
  %490 = vmatpush1.bf16.msra.mxu0 0
  %491 = vmatprep.subr.bf16.mxu0 0
  %492 = vmatpush1.bf16.msra.mxu0 0
  %493 = vmatprep.subr.bf16.mxu0 0
  %494 = vmatpush1.bf16.msra.mxu0 0
  %495 = vmatprep.subr.bf16.mxu0 0
  %496 = vmatpush1.bf16.msra.mxu0 0
  %497 = vmatprep.subr.bf16.mxu0 0
  %498 = vmatpush1.bf16.msra.mxu0 0
  %499 = vmatprep.subr.bf16.mxu0 0
  %500 = vmatpush1.bf16.msra.mxu0 0
  %501 = vmatprep.subr.bf16.mxu0 0
  %502 = vmatpush1.bf16.msra.mxu0 0
  %503 = vmatprep.subr.bf16.mxu0 0
  %504 = vmatpush1.bf16.msra.mxu0 0
  %505 = vmatprep.subr.bf16.mxu0 0
  %506 = vmatpush1.bf16.msra.mxu0 0
  %507 = vmatprep.subr.bf16.mxu0 0
  %508 = vmatpush1.bf16.msra.mxu0 0
  %509 = vmatprep.subr.bf16.mxu0 0
  %510 = vmatpush1.bf16.msra.mxu0 0
  %511 = vmatprep.subr.bf16.mxu0 0
  %512 = vmatpush1.bf16.msra.mxu0 0
  %513 = vmatprep.subr.bf16.mxu0 0
  %514 = vmatpush1.bf16.msra.mxu0 0
  %515 = vmatprep.mubr.bf16.mxu0 0
  %516 = vmatmul.mubr.bf16.gmra.mrb[0].mxu0 %v309
  %v517 = vpop.f32.mrb[0].mxu0
  %v518 = vadd.f32 0.0, %v517
  %v519 = vpop.f32.mrb[0].mxu0
  %v520 = vadd.f32 0.0, %v519
  %v521 = vpop.f32.mrb[0].mxu0
  %v522 = vadd.f32 0.0, %v521
  %v523 = vpop.f32.mrb[0].mxu0
  %v524 = vadd.f32 0.0, %v523
  %525 = vdwg.mxu0
  %526 = vmatprep.subr.bf16.mxu0 %v222
  %527 = vmatpush1.bf16.msra.mxu0 %v221
  %528 = vmatprep.subr.bf16.mxu0 %v238
  %529 = vmatpush1.bf16.msra.mxu0 %v237
  %530 = vmatprep.subr.bf16.mxu0 %v254
  %531 = vmatpush1.bf16.msra.mxu0 %v253
  %532 = vmatprep.subr.bf16.mxu0 0
  %533 = vmatpush1.bf16.msra.mxu0 0
  %534 = vmatprep.subr.bf16.mxu0 0
  %535 = vmatpush1.bf16.msra.mxu0 0
  %536 = vmatprep.subr.bf16.mxu0 0
  %537 = vmatpush1.bf16.msra.mxu0 0
  %538 = vmatprep.subr.bf16.mxu0 0
  %539 = vmatpush1.bf16.msra.mxu0 0
  %540 = vmatprep.subr.bf16.mxu0 0
  %541 = vmatpush1.bf16.msra.mxu0 0
  %542 = vmatprep.subr.bf16.mxu0 0
  %543 = vmatpush1.bf16.msra.mxu0 0
  %544 = vmatprep.subr.bf16.mxu0 0
  %545 = vmatpush1.bf16.msra.mxu0 0
  %546 = vmatprep.subr.bf16.mxu0 0
  %547 = vmatpush1.bf16.msra.mxu0 0
  %548 = vmatprep.subr.bf16.mxu0 0
  %549 = vmatpush1.bf16.msra.mxu0 0
  %550 = vmatprep.subr.bf16.mxu0 0
  %551 = vmatpush1.bf16.msra.mxu0 0
  %552 = vmatprep.subr.bf16.mxu0 0
  %553 = vmatpush1.bf16.msra.mxu0 0
  %554 = vmatprep.subr.bf16.mxu0 0
  %555 = vmatpush1.bf16.msra.mxu0 0
  %556 = vmatprep.subr.bf16.mxu0 0
  %557 = vmatpush1.bf16.msra.mxu0 0
  %558 = vmatprep.mubr.bf16.mxu0 0
  %559 = vmatmul.mubr.bf16.gmra.mrb[0].mxu0 %v309
  %v560 = vpop.f32.mrb[0].mxu0
  %v561 = vadd.f32 0.0, %v560
  %v562 = vpop.f32.mrb[0].mxu0
  %v563 = vadd.f32 0.0, %v562
  %v564 = vpop.f32.mrb[0].mxu0
  %v565 = vadd.f32 0.0, %v564
  %v566 = vpop.f32.mrb[0].mxu0
  %v567 = vadd.f32 0.0, %v566
  %568 = vdwg.mxu0
  %569 = vmatprep.subr.bf16.mxu0 %v224
  %570 = vmatpush1.bf16.msra.mxu0 %v223
  %571 = vmatprep.subr.bf16.mxu0 %v240
  %572 = vmatpush1.bf16.msra.mxu0 %v239
  %573 = vmatprep.subr.bf16.mxu0 %v256
  %574 = vmatpush1.bf16.msra.mxu0 %v255
  %575 = vmatprep.subr.bf16.mxu0 0
  %576 = vmatpush1.bf16.msra.mxu0 0
  %577 = vmatprep.subr.bf16.mxu0 0
  %578 = vmatpush1.bf16.msra.mxu0 0
  %579 = vmatprep.subr.bf16.mxu0 0
  %580 = vmatpush1.bf16.msra.mxu0 0
  %581 = vmatprep.subr.bf16.mxu0 0
  %582 = vmatpush1.bf16.msra.mxu0 0
  %583 = vmatprep.subr.bf16.mxu0 0
  %584 = vmatpush1.bf16.msra.mxu0 0
  %585 = vmatprep.subr.bf16.mxu0 0
  %586 = vmatpush1.bf16.msra.mxu0 0
  %587 = vmatprep.subr.bf16.mxu0 0
  %588 = vmatpush1.bf16.msra.mxu0 0
  %589 = vmatprep.subr.bf16.mxu0 0
  %590 = vmatpush1.bf16.msra.mxu0 0
  %591 = vmatprep.subr.bf16.mxu0 0
  %592 = vmatpush1.bf16.msra.mxu0 0
  %593 = vmatprep.subr.bf16.mxu0 0
  %594 = vmatpush1.bf16.msra.mxu0 0
  %595 = vmatprep.subr.bf16.mxu0 0
  %596 = vmatpush1.bf16.msra.mxu0 0
  %597 = vmatprep.subr.bf16.mxu0 0
  %598 = vmatpush1.bf16.msra.mxu0 0
  %599 = vmatprep.subr.bf16.mxu0 0
  %600 = vmatpush1.bf16.msra.mxu0 0
  %601 = vmatprep.mubr.bf16.mxu0 0
  %602 = vmatmul.mubr.bf16.gmra.mrb[0].mxu0 %v309
  %v603 = vpop.f32.mrb[0].mxu0
  %v604 = vadd.f32 0.0, %v603
  %v605 = vpop.f32.mrb[0].mxu0
  %v606 = vadd.f32 0.0, %v605
  %v607 = vpop.f32.mrb[0].mxu0
  %v608 = vadd.f32 0.0, %v607
  %v609 = vpop.f32.mrb[0].mxu0
  %v610 = vadd.f32 0.0, %v609
  %611 = vdwg.mxu0
  %612 = vmatprep.subr.bf16.mxu0 %v226
  %613 = vmatpush1.bf16.msra.mxu0 %v225
  %614 = vmatprep.subr.bf16.mxu0 %v242
  %615 = vmatpush1.bf16.msra.mxu0 %v241
  %616 = vmatprep.subr.bf16.mxu0 %v258
  %617 = vmatpush1.bf16.msra.mxu0 %v257
  %618 = vmatprep.subr.bf16.mxu0 0
  %619 = vmatpush1.bf16.msra.mxu0 0
  %620 = vmatprep.subr.bf16.mxu0 0
  %621 = vmatpush1.bf16.msra.mxu0 0
  %622 = vmatprep.subr.bf16.mxu0 0
  %623 = vmatpush1.bf16.msra.mxu0 0
  %624 = vmatprep.subr.bf16.mxu0 0
  %625 = vmatpush1.bf16.msra.mxu0 0
  %626 = vmatprep.subr.bf16.mxu0 0
  %627 = vmatpush1.bf16.msra.mxu0 0
  %628 = vmatprep.subr.bf16.mxu0 0
  %629 = vmatpush1.bf16.msra.mxu0 0
  %630 = vmatprep.subr.bf16.mxu0 0
  %631 = vmatpush1.bf16.msra.mxu0 0
  %632 = vmatprep.subr.bf16.mxu0 0
  %633 = vmatpush1.bf16.msra.mxu0 0
  %634 = vmatprep.subr.bf16.mxu0 0
  %635 = vmatpush1.bf16.msra.mxu0 0
  %636 = vmatprep.subr.bf16.mxu0 0
  %637 = vmatpush1.bf16.msra.mxu0 0
  %638 = vmatprep.subr.bf16.mxu0 0
  %639 = vmatpush1.bf16.msra.mxu0 0
  %640 = vmatprep.subr.bf16.mxu0 0
  %641 = vmatpush1.bf16.msra.mxu0 0
  %642 = vmatprep.subr.bf16.mxu0 0
  %643 = vmatpush1.bf16.msra.mxu0 0
  %644 = vmatprep.mubr.bf16.mxu0 0
  %645 = vmatmul.mubr.bf16.gmra.mrb[0].mxu0 %v309
  %v646 = vpop.f32.mrb[0].mxu0
  %v647 = vadd.f32 0.0, %v646
  %v648 = vpop.f32.mrb[0].mxu0
  %v649 = vadd.f32 0.0, %v648
  %v650 = vpop.f32.mrb[0].mxu0
  %v651 = vadd.f32 0.0, %v650
  %v652 = vpop.f32.mrb[0].mxu0
  %v653 = vadd.f32 0.0, %v652
  %654 = vdwg.mxu0
  %v655 = vmul.f32 %v346, 0.2
  %v656 = vmul.f32 %v348, 0.2
  %v657 = vmul.f32 %v389, 0.2
  %v658 = vmul.f32 %v391, 0.2
  %v659 = vmul.f32 %v432, 0.2
  %v660 = vmul.f32 %v434, 0.2
  %v661 = vmul.f32 %v475, 0.2
  %v662 = vmul.f32 %v477, 0.2
  %v663 = vmul.f32 %v518, 0.2
  %v664 = vmul.f32 %v520, 0.2
  %v665 = vmul.f32 %v561, 0.2
  %v666 = vmul.f32 %v563, 0.2
  %v667 = vmul.f32 %v604, 0.2
  %v668 = vmul.f32 %v606, 0.2
  %v669 = vmul.f32 %v647, 0.2
  %v670 = vmul.f32 %v649, 0.2
  %v671 = vmul.f32 %v350, 0.2
  %v672 = vmul.f32 %v352, 0.2
  %v673 = vmul.f32 %v393, 0.2
  %v674 = vmul.f32 %v395, 0.2
  %v675 = vmul.f32 %v436, 0.2
  %v676 = vmul.f32 %v438, 0.2
  %v677 = vmul.f32 %v479, 0.2
  %v678 = vmul.f32 %v481, 0.2
  %v679 = vmul.f32 %v522, 0.2
  %v680 = vmul.f32 %v524, 0.2
  %v681 = vmul.f32 %v565, 0.2
  %v682 = vmul.f32 %v567, 0.2
  %v683 = vmul.f32 %v608, 0.2
  %v684 = vmul.f32 %v610, 0.2
  %v685 = vmul.f32 %v651, 0.2
  %v686 = vmul.f32 %v653, 0.2
  %v687 = vmax.f32 %v346, %v655
  %v688 = vmax.f32 %v348, %v656
  %v689 = vmax.f32 %v389, %v657
  %v690 = vmax.f32 %v391, %v658
  %v691 = vmax.f32 %v432, %v659
  %v692 = vmax.f32 %v434, %v660
  %v693 = vmax.f32 %v475, %v661
  %v694 = vmax.f32 %v477, %v662
  %v695 = vmax.f32 %v518, %v663
  %v696 = vmax.f32 %v520, %v664
  %v697 = vmax.f32 %v561, %v665
  %v698 = vmax.f32 %v563, %v666
  %v699 = vmax.f32 %v604, %v667
  %v700 = vmax.f32 %v606, %v668
  %v701 = vmax.f32 %v647, %v669
  %v702 = vmax.f32 %v649, %v670
  %v703 = vmax.f32 %v350, %v671
  %v704 = vmax.f32 %v352, %v672
  %v705 = vmax.f32 %v393, %v673
  %v706 = vmax.f32 %v395, %v674
  %v707 = vmax.f32 %v436, %v675
  %v708 = vmax.f32 %v438, %v676
  %v709 = vmax.f32 %v479, %v677
  %v710 = vmax.f32 %v481, %v678
  %v711 = vmax.f32 %v522, %v679
  %v712 = vmax.f32 %v524, %v680
  %v713 = vmax.f32 %v565, %v681
  %v714 = vmax.f32 %v567, %v682
  %v715 = vmax.f32 %v608, %v683
  %v716 = vmax.f32 %v610, %v684
  %v717 = vmax.f32 %v651, %v685
  %v718 = vmax.f32 %v653, %v686
  %v719 = vpack.c.bf16 %v703, %v687
  %v720 = vpack.c.bf16 %v704, %v688
  %v721 = vpack.c.bf16 %v705, %v689
  %v722 = vpack.c.bf16 %v706, %v690
  %v723 = vpack.c.bf16 %v707, %v691
  %v724 = vpack.c.bf16 %v708, %v692
  %v725 = vpack.c.bf16 %v709, %v693
  %v726 = vpack.c.bf16 %v710, %v694
  %v727 = vpack.c.bf16 %v711, %v695
  %v728 = vpack.c.bf16 %v712, %v696
  %v729 = vpack.c.bf16 %v713, %v697
  %v730 = vpack.c.bf16 %v714, %v698
  %v731 = vpack.c.bf16 %v715, %v699
  %v732 = vpack.c.bf16 %v716, %v700
  %v733 = vpack.c.bf16 %v717, %v701
  %v734 = vpack.c.bf16 %v718, %v702
  %v751 = vunpack.c.l.b16 %v719
  %v752 = vunpack.c.l.b16 %v720
  %v753 = vunpack.c.l.b16 %v721
  %v754 = vunpack.c.l.b16 %v722
  %v755 = vunpack.c.l.b16 %v723
  %v756 = vunpack.c.l.b16 %v724
  %v757 = vunpack.c.l.b16 %v725
  %v758 = vunpack.c.l.b16 %v726
  %v759 = vunpack.c.l.b16 %v727
  %v760 = vunpack.c.l.b16 %v728
  %v761 = vunpack.c.l.b16 %v729
  %v762 = vunpack.c.l.b16 %v730
  %v763 = vunpack.c.l.b16 %v731
  %v764 = vunpack.c.l.b16 %v732
  %v765 = vunpack.c.l.b16 %v733
  %v766 = vunpack.c.l.b16 %v734
  %v767 = vunpack.c.h.b16 %v719
  %v768 = vunpack.c.h.b16 %v720
  %v769 = vunpack.c.h.b16 %v721
  %v770 = vunpack.c.h.b16 %v722
  %v771 = vunpack.c.h.b16 %v723
  %v772 = vunpack.c.h.b16 %v724
  %v773 = vunpack.c.h.b16 %v725
  %v774 = vunpack.c.h.b16 %v726
  %v775 = vunpack.c.h.b16 %v727
  %v776 = vunpack.c.h.b16 %v728
  %v777 = vunpack.c.h.b16 %v729
  %v778 = vunpack.c.h.b16 %v730
  %v779 = vunpack.c.h.b16 %v731
  %v780 = vunpack.c.h.b16 %v732
  %v781 = vunpack.c.h.b16 %v733
  %v782 = vunpack.c.h.b16 %v734
  %v783 = vpack.c.b16 %v752, %v751
  %v784 = vpack.c.b16 %v754, %v753
  %v785 = vpack.c.b16 %v756, %v755
  %v786 = vpack.c.b16 %v758, %v757
  %v787 = vpack.c.b16 %v760, %v759
  %v788 = vpack.c.b16 %v762, %v761
  %v789 = vpack.c.b16 %v764, %v763
  %v790 = vpack.c.b16 %v766, %v765
  %v791 = vpack.c.b16 %v768, %v767
  %v792 = vpack.c.b16 %v770, %v769
  %v793 = vpack.c.b16 %v772, %v771
  %v794 = vpack.c.b16 %v774, %v773
  %v795 = vpack.c.b16 %v776, %v775
  %v796 = vpack.c.b16 %v778, %v777
  %v797 = vpack.c.b16 %v780, %v779
  %v798 = vpack.c.b16 %v782, %v781
  %815 = vst [vmem:[%s2] sm:$0xff] %v783
  %816 = vst [vmem:[%s2 + $0x8] sm:$0xff] %v784
  %817 = vst [vmem:[%s2 + $0x10] sm:$0xff] %v785
  %818 = vst [vmem:[%s2 + $0x18] sm:$0xff] %v786
  %819 = vst [vmem:[%s2 + $0x20] sm:$0xff] %v787
  %820 = vst [vmem:[%s2 + $0x28] sm:$0xff] %v788
  %821 = vst [vmem:[%s2 + $0x30] sm:$0xff] %v789
  %822 = vst [vmem:[%s2 + $0x38] sm:$0xff] %v790
  %823 = vst [vmem:[%s2 + $0x40] sm:$0xff] %v791
  %824 = vst [vmem:[%s2 + $0x48] sm:$0xff] %v792
  %825 = vst [vmem:[%s2 + $0x50] sm:$0xff] %v793
  %826 = vst [vmem:[%s2 + $0x58] sm:$0xff] %v794
  %827 = vst [vmem:[%s2 + $0x60] sm:$0xff] %v795
  %828 = vst [vmem:[%s2 + $0x68] sm:$0xff] %v796
  %829 = vst [vmem:[%s2 + $0x70] sm:$0xff] %v797
  %830 = vst [vmem:[%s2 + $0x78] sm:$0xff] %v798
  // Predicated region
  $region10: #{discriminator_forward.4} parent=0 // pred_check
    _
  $region11: #{discriminator_forward.4} parent=0 // pred_check_branch
    %832 = sbr.rel (0) target = $region13
  $region12: #{discriminator_forward.4} parent=0 // pred_region
    _
  $region13: #{discriminator_forward.4} parent=0 // pred_fallthru
    _
  // Predicated region
  $region14: #{discriminator_forward.4} parent=0 // pred_check
    _
  $region15: #{discriminator_forward.4} parent=0 // pred_check_branch
    %834 = sbr.rel (0) target = $region17
  $region16: #{discriminator_forward.4} parent=0 // pred_region
    _
  $region17: #{discriminator_forward.4} parent=0 // pred_fallthru
    _

// kernel: discriminator_forward.5
$region0: #{discriminator_forward.5}
  #allocation0 [shape = 'u32[]', space=smem, size = 0x4, offset = 0x4, fixed_abs, tag = 'smem constant byte address 0x4 - core index']
  #allocation1 [shape = 'u32[144,128]{1,0:T(1,128)}', space=vmem, size = 0x12000, scoped, tag = 'internal scratch']
  %s0 = inlined_call_operand.vmem [shape: bf16[32,256], index: 0, kind: input, shape index: {}]
  %s1 = inlined_call_operand.vmem [shape: bf16[256,512], index: 1, kind: input, shape index: {}]
  %s2 = inlined_call_operand.vmem [shape: f32[32,1], index: 2, kind: input, shape index: {}]
  %s3 = inlined_call_operand.vmem [shape: f32[32,1], index: 3, kind: input, shape index: {}]
  %s4 = inlined_call_operand.vmem [shape: bf16[32,512], index: 4, kind: output, shape index: {}]
  %s5 = sld [smem:[#allocation0]]
  $region26: #{discriminator_forward.5} parent=0
    _
  %s7 = ssub.s32 1, %s5
  %s8 = scalar_select 0, %s7, %s5
  // Predicated region
  $region2: #{discriminator_forward.5} parent=0 // pred_check
    _
  $region3: #{discriminator_forward.5} parent=0 // pred_check_branch
    %10 = sbr.rel (0) target = $region5
  $region4: #{discriminator_forward.5} parent=0 // pred_region
    _
  $region5: #{discriminator_forward.5} parent=0 // pred_fallthru
    _
  // Predicated region
  $region6: #{discriminator_forward.5} parent=0 // pred_check
    _
  $region7: #{discriminator_forward.5} parent=0 // pred_check_branch
    %12 = sbr.rel (0) target = $region9
  $region8: #{discriminator_forward.5} parent=0 // pred_region
    _
  $region9: #{discriminator_forward.5} parent=0 // pred_fallthru
    _
  // Predicated region
  $region10: #{discriminator_forward.5} parent=0 // pred_check
    _
  $region11: #{discriminator_forward.5} parent=0 // pred_check_branch
    %14 = sbr.rel (0) target = $region13
  $region12: #{discriminator_forward.5} parent=0 // pred_region
    _
  $region13: #{discriminator_forward.5} parent=0 // pred_fallthru
    _
  // Predicated region
  $region14: #{discriminator_forward.5} parent=0 // pred_check
    _
  $region15: #{discriminator_forward.5} parent=0 // pred_check_branch
    %16 = sbr.rel (0) target = $region17
  $region16: #{discriminator_forward.5} parent=0 // pred_region
    _
  $region17: #{discriminator_forward.5} parent=0 // pred_fallthru
    _
  %v17 = vld [vmem:[%s0] sm:$0xff]
  %v18 = vld [vmem:[%s0 + $0x8] sm:$0xff]
  %v19 = vld [vmem:[%s0 + $0x10] sm:$0xff]
  %v20 = vld [vmem:[%s0 + $0x18] sm:$0xff]
  %v21 = vld [vmem:[%s1] sm:$0xff]
  %v22 = vld [vmem:[%s1 + $0x8] sm:$0xff]
  %v23 = vld [vmem:[%s1 + $0x10] sm:$0xff]
  %v24 = vld [vmem:[%s1 + $0x18] sm:$0xff]
  %v25 = vld [vmem:[%s1 + $0x20] sm:$0xff]
  %v26 = vld [vmem:[%s1 + $0x28] sm:$0xff]
  %v27 = vld [vmem:[%s1 + $0x30] sm:$0xff]
  %v28 = vld [vmem:[%s1 + $0x38] sm:$0xff]
  %v29 = vld [vmem:[%s1 + $0x40] sm:$0xff]
  %v30 = vld [vmem:[%s1 + $0x48] sm:$0xff]
  %v31 = vld [vmem:[%s1 + $0x50] sm:$0xff]
  %v32 = vld [vmem:[%s1 + $0x58] sm:$0xff]
  %v33 = vld [vmem:[%s1 + $0x60] sm:$0xff]
  %v34 = vld [vmem:[%s1 + $0x68] sm:$0xff]
  %v35 = vld [vmem:[%s1 + $0x70] sm:$0xff]
  %v36 = vld [vmem:[%s1 + $0x78] sm:$0xff]
  %v37 = vld [vmem:[%s1 + $0x80] sm:$0xff]
  %v38 = vld [vmem:[%s1 + $0x88] sm:$0xff]
  %v39 = vld [vmem:[%s1 + $0x90] sm:$0xff]
  %v40 = vld [vmem:[%s1 + $0x98] sm:$0xff]
  %v41 = vld [vmem:[%s1 + $0xa0] sm:$0xff]
  %v42 = vld [vmem:[%s1 + $0xa8] sm:$0xff]
  %v43 = vld [vmem:[%s1 + $0xb0] sm:$0xff]
  %v44 = vld [vmem:[%s1 + $0xb8] sm:$0xff]
  %v45 = vld [vmem:[%s1 + $0xc0] sm:$0xff]
  %v46 = vld [vmem:[%s1 + $0xc8] sm:$0xff]
  %v47 = vld [vmem:[%s1 + $0xd0] sm:$0xff]
  %v48 = vld [vmem:[%s1 + $0xd8] sm:$0xff]
  %v49 = vld [vmem:[%s1 + $0xe0] sm:$0xff]
  %v50 = vld [vmem:[%s1 + $0xe8] sm:$0xff]
  %v51 = vld [vmem:[%s1 + $0xf0] sm:$0xff]
  %v52 = vld [vmem:[%s1 + $0xf8] sm:$0xff]
  %v53 = vld [vmem:[%s1 + $0x100] sm:$0xff]
  %v54 = vld [vmem:[%s1 + $0x108] sm:$0xff]
  %v55 = vld [vmem:[%s1 + $0x110] sm:$0xff]
  %v56 = vld [vmem:[%s1 + $0x118] sm:$0xff]
  %v57 = vld [vmem:[%s1 + $0x120] sm:$0xff]
  %v58 = vld [vmem:[%s1 + $0x128] sm:$0xff]
  %v59 = vld [vmem:[%s1 + $0x130] sm:$0xff]
  %v60 = vld [vmem:[%s1 + $0x138] sm:$0xff]
  %v61 = vld [vmem:[%s1 + $0x140] sm:$0xff]
  %v62 = vld [vmem:[%s1 + $0x148] sm:$0xff]
  %v63 = vld [vmem:[%s1 + $0x150] sm:$0xff]
  %v64 = vld [vmem:[%s1 + $0x158] sm:$0xff]
  %v65 = vld [vmem:[%s1 + $0x160] sm:$0xff]
  %v66 = vld [vmem:[%s1 + $0x168] sm:$0xff]
  %v67 = vld [vmem:[%s1 + $0x170] sm:$0xff]
  %v68 = vld [vmem:[%s1 + $0x178] sm:$0xff]
  %v69 = vld [vmem:[%s1 + $0x180] sm:$0xff]
  %v70 = vld [vmem:[%s1 + $0x188] sm:$0xff]
  %v71 = vld [vmem:[%s1 + $0x190] sm:$0xff]
  %v72 = vld [vmem:[%s1 + $0x198] sm:$0xff]
  %v73 = vld [vmem:[%s1 + $0x1a0] sm:$0xff]
  %v74 = vld [vmem:[%s1 + $0x1a8] sm:$0xff]
  %v75 = vld [vmem:[%s1 + $0x1b0] sm:$0xff]
  %v76 = vld [vmem:[%s1 + $0x1b8] sm:$0xff]
  %v77 = vld [vmem:[%s1 + $0x1c0] sm:$0xff]
  %v78 = vld [vmem:[%s1 + $0x1c8] sm:$0xff]
  %v79 = vld [vmem:[%s1 + $0x1d0] sm:$0xff]
  %v80 = vld [vmem:[%s1 + $0x1d8] sm:$0xff]
  %v81 = vld [vmem:[%s1 + $0x1e0] sm:$0xff]
  %v82 = vld [vmem:[%s1 + $0x1e8] sm:$0xff]
  %v83 = vld [vmem:[%s1 + $0x1f0] sm:$0xff]
  %v84 = vld [vmem:[%s1 + $0x1f8] sm:$0xff]
  %v89 = vunpack.c.l.b16 %v17
  %v90 = vunpack.c.h.b16 %v17
  %v91 = vunpack.c.l.b16 %v18
  %v92 = vunpack.c.h.b16 %v18
  %v93 = vunpack.c.l.b16 %v19
  %v94 = vunpack.c.h.b16 %v19
  %v95 = vunpack.c.l.b16 %v20
  %v96 = vunpack.c.h.b16 %v20
  %v97 = vpack.c.b16 %v91, %v89
  %v98 = vpack.c.b16 %v92, %v90
  %v99 = vpack.c.b16 %v95, %v93
  %v100 = vpack.c.b16 %v96, %v94
  %v169 = vunpack.c.l.b16 %v21
  %v170 = vunpack.c.h.b16 %v21
  %v171 = vunpack.c.l.b16 %v22
  %v172 = vunpack.c.h.b16 %v22
  %v173 = vunpack.c.l.b16 %v23
  %v174 = vunpack.c.h.b16 %v23
  %v175 = vunpack.c.l.b16 %v24
  %v176 = vunpack.c.h.b16 %v24
  %v177 = vunpack.c.l.b16 %v25
  %v178 = vunpack.c.h.b16 %v25
  %v179 = vunpack.c.l.b16 %v26
  %v180 = vunpack.c.h.b16 %v26
  %v181 = vunpack.c.l.b16 %v27
  %v182 = vunpack.c.h.b16 %v27
  %v183 = vunpack.c.l.b16 %v28
  %v184 = vunpack.c.h.b16 %v28
  %v185 = vunpack.c.l.b16 %v29
  %v186 = vunpack.c.h.b16 %v29
  %v187 = vunpack.c.l.b16 %v30
  %v188 = vunpack.c.h.b16 %v30
  %v189 = vunpack.c.l.b16 %v31
  %v190 = vunpack.c.h.b16 %v31
  %v191 = vunpack.c.l.b16 %v32
  %v192 = vunpack.c.h.b16 %v32
  %v193 = vunpack.c.l.b16 %v33
  %v194 = vunpack.c.h.b16 %v33
  %v195 = vunpack.c.l.b16 %v34
  %v196 = vunpack.c.h.b16 %v34
  %v197 = vunpack.c.l.b16 %v35
  %v198 = vunpack.c.h.b16 %v35
  %v199 = vunpack.c.l.b16 %v36
  %v200 = vunpack.c.h.b16 %v36
  %v201 = vunpack.c.l.b16 %v37
  %v202 = vunpack.c.h.b16 %v37
  %v203 = vunpack.c.l.b16 %v38
  %v204 = vunpack.c.h.b16 %v38
  %v205 = vunpack.c.l.b16 %v39
  %v206 = vunpack.c.h.b16 %v39
  %v207 = vunpack.c.l.b16 %v40
  %v208 = vunpack.c.h.b16 %v40
  %v209 = vunpack.c.l.b16 %v41
  %v210 = vunpack.c.h.b16 %v41
  %v211 = vunpack.c.l.b16 %v42
  %v212 = vunpack.c.h.b16 %v42
  %v213 = vunpack.c.l.b16 %v43
  %v214 = vunpack.c.h.b16 %v43
  %v215 = vunpack.c.l.b16 %v44
  %v216 = vunpack.c.h.b16 %v44
  %v217 = vunpack.c.l.b16 %v45
  %v218 = vunpack.c.h.b16 %v45
  %v219 = vunpack.c.l.b16 %v46
  %v220 = vunpack.c.h.b16 %v46
  %v221 = vunpack.c.l.b16 %v47
  %v222 = vunpack.c.h.b16 %v47
  %v223 = vunpack.c.l.b16 %v48
  %v224 = vunpack.c.h.b16 %v48
  %v225 = vunpack.c.l.b16 %v49
  %v226 = vunpack.c.h.b16 %v49
  %v227 = vunpack.c.l.b16 %v50
  %v228 = vunpack.c.h.b16 %v50
  %v229 = vunpack.c.l.b16 %v51
  %v230 = vunpack.c.h.b16 %v51
  %v231 = vunpack.c.l.b16 %v52
  %v232 = vunpack.c.h.b16 %v52
  %v233 = vunpack.c.l.b16 %v53
  %v234 = vunpack.c.h.b16 %v53
  %v235 = vunpack.c.l.b16 %v54
  %v236 = vunpack.c.h.b16 %v54
  %v237 = vunpack.c.l.b16 %v55
  %v238 = vunpack.c.h.b16 %v55
  %v239 = vunpack.c.l.b16 %v56
  %v240 = vunpack.c.h.b16 %v56
  %v241 = vunpack.c.l.b16 %v57
  %v242 = vunpack.c.h.b16 %v57
  %v243 = vunpack.c.l.b16 %v58
  %v244 = vunpack.c.h.b16 %v58
  %v245 = vunpack.c.l.b16 %v59
  %v246 = vunpack.c.h.b16 %v59
  %v247 = vunpack.c.l.b16 %v60
  %v248 = vunpack.c.h.b16 %v60
  %v249 = vunpack.c.l.b16 %v61
  %v250 = vunpack.c.h.b16 %v61
  %v251 = vunpack.c.l.b16 %v62
  %v252 = vunpack.c.h.b16 %v62
  %v253 = vunpack.c.l.b16 %v63
  %v254 = vunpack.c.h.b16 %v63
  %v255 = vunpack.c.l.b16 %v64
  %v256 = vunpack.c.h.b16 %v64
  %v257 = vunpack.c.l.b16 %v65
  %v258 = vunpack.c.h.b16 %v65
  %v259 = vunpack.c.l.b16 %v66
  %v260 = vunpack.c.h.b16 %v66
  %v261 = vunpack.c.l.b16 %v67
  %v262 = vunpack.c.h.b16 %v67
  %v263 = vunpack.c.l.b16 %v68
  %v264 = vunpack.c.h.b16 %v68
  %v265 = vunpack.c.l.b16 %v69
  %v266 = vunpack.c.h.b16 %v69
  %v267 = vunpack.c.l.b16 %v70
  %v268 = vunpack.c.h.b16 %v70
  %v269 = vunpack.c.l.b16 %v71
  %v270 = vunpack.c.h.b16 %v71
  %v271 = vunpack.c.l.b16 %v72
  %v272 = vunpack.c.h.b16 %v72
  %v273 = vunpack.c.l.b16 %v73
  %v274 = vunpack.c.h.b16 %v73
  %v275 = vunpack.c.l.b16 %v74
  %v276 = vunpack.c.h.b16 %v74
  %v277 = vunpack.c.l.b16 %v75
  %v278 = vunpack.c.h.b16 %v75
  %v279 = vunpack.c.l.b16 %v76
  %v280 = vunpack.c.h.b16 %v76
  %v281 = vunpack.c.l.b16 %v77
  %v282 = vunpack.c.h.b16 %v77
  %v283 = vunpack.c.l.b16 %v78
  %v284 = vunpack.c.h.b16 %v78
  %v285 = vunpack.c.l.b16 %v79
  %v286 = vunpack.c.h.b16 %v79
  %v287 = vunpack.c.l.b16 %v80
  %v288 = vunpack.c.h.b16 %v80
  %v289 = vunpack.c.l.b16 %v81
  %v290 = vunpack.c.h.b16 %v81
  %v291 = vunpack.c.l.b16 %v82
  %v292 = vunpack.c.h.b16 %v82
  %v293 = vunpack.c.l.b16 %v83
  %v294 = vunpack.c.h.b16 %v83
  %v295 = vunpack.c.l.b16 %v84
  %v296 = vunpack.c.h.b16 %v84
  %v297 = vpack.c.b16 %v173, %v169
  %v298 = vpack.c.b16 %v174, %v170
  %v299 = vpack.c.b16 %v175, %v171
  %v300 = vpack.c.b16 %v176, %v172
  %v301 = vpack.c.b16 %v181, %v177
  %v302 = vpack.c.b16 %v182, %v178
  %v303 = vpack.c.b16 %v183, %v179
  %v304 = vpack.c.b16 %v184, %v180
  %v305 = vpack.c.b16 %v189, %v185
  %v306 = vpack.c.b16 %v190, %v186
  %v307 = vpack.c.b16 %v191, %v187
  %v308 = vpack.c.b16 %v192, %v188
  %v309 = vpack.c.b16 %v197, %v193
  %v310 = vpack.c.b16 %v198, %v194
  %v311 = vpack.c.b16 %v199, %v195
  %v312 = vpack.c.b16 %v200, %v196
  %v313 = vpack.c.b16 %v205, %v201
  %v314 = vpack.c.b16 %v206, %v202
  %v315 = vpack.c.b16 %v207, %v203
  %v316 = vpack.c.b16 %v208, %v204
  %v317 = vpack.c.b16 %v213, %v209
  %v318 = vpack.c.b16 %v214, %v210
  %v319 = vpack.c.b16 %v215, %v211
  %v320 = vpack.c.b16 %v216, %v212
  %v321 = vpack.c.b16 %v221, %v217
  %v322 = vpack.c.b16 %v222, %v218
  %v323 = vpack.c.b16 %v223, %v219
  %v324 = vpack.c.b16 %v224, %v220
  %v325 = vpack.c.b16 %v229, %v225
  %v326 = vpack.c.b16 %v230, %v226
  %v327 = vpack.c.b16 %v231, %v227
  %v328 = vpack.c.b16 %v232, %v228
  %v329 = vpack.c.b16 %v237, %v233
  %v330 = vpack.c.b16 %v238, %v234
  %v331 = vpack.c.b16 %v239, %v235
  %v332 = vpack.c.b16 %v240, %v236
  %v333 = vpack.c.b16 %v245, %v241
  %v334 = vpack.c.b16 %v246, %v242
  %v335 = vpack.c.b16 %v247, %v243
  %v336 = vpack.c.b16 %v248, %v244
  %v337 = vpack.c.b16 %v253, %v249
  %v338 = vpack.c.b16 %v254, %v250
  %v339 = vpack.c.b16 %v255, %v251
  %v340 = vpack.c.b16 %v256, %v252
  %v341 = vpack.c.b16 %v261, %v257
  %v342 = vpack.c.b16 %v262, %v258
  %v343 = vpack.c.b16 %v263, %v259
  %v344 = vpack.c.b16 %v264, %v260
  %v345 = vpack.c.b16 %v269, %v265
  %v346 = vpack.c.b16 %v270, %v266
  %v347 = vpack.c.b16 %v271, %v267
  %v348 = vpack.c.b16 %v272, %v268
  %v349 = vpack.c.b16 %v277, %v273
  %v350 = vpack.c.b16 %v278, %v274
  %v351 = vpack.c.b16 %v279, %v275
  %v352 = vpack.c.b16 %v280, %v276
  %v353 = vpack.c.b16 %v285, %v281
  %v354 = vpack.c.b16 %v286, %v282
  %v355 = vpack.c.b16 %v287, %v283
  %v356 = vpack.c.b16 %v288, %v284
  %v357 = vpack.c.b16 %v293, %v289
  %v358 = vpack.c.b16 %v294, %v290
  %v359 = vpack.c.b16 %v295, %v291
  %v360 = vpack.c.b16 %v296, %v292
  %425 = vmatprep.subr.bf16.mxu0 %v298
  %426 = vmatpush1.bf16.msra.mxu0 %v297
  %427 = vmatprep.subr.bf16.mxu0 %v302
  %428 = vmatpush1.bf16.msra.mxu0 %v301
  %429 = vmatprep.subr.bf16.mxu0 %v306
  %430 = vmatpush1.bf16.msra.mxu0 %v305
  %431 = vmatprep.subr.bf16.mxu0 %v310
  %432 = vmatpush1.bf16.msra.mxu0 %v309
  %433 = vmatprep.subr.bf16.mxu0 %v314
  %434 = vmatpush1.bf16.msra.mxu0 %v313
  %435 = vmatprep.subr.bf16.mxu0 %v318
  %436 = vmatpush1.bf16.msra.mxu0 %v317
  %437 = vmatprep.subr.bf16.mxu0 %v322
  %438 = vmatpush1.bf16.msra.mxu0 %v321
  %439 = vmatprep.subr.bf16.mxu0 %v326
  %440 = vmatpush1.bf16.msra.mxu0 %v325
  %441 = vmatprep.subr.bf16.mxu0 %v330
  %442 = vmatpush1.bf16.msra.mxu0 %v329
  %443 = vmatprep.subr.bf16.mxu0 %v334
  %444 = vmatpush1.bf16.msra.mxu0 %v333
  %445 = vmatprep.subr.bf16.mxu0 %v338
  %446 = vmatpush1.bf16.msra.mxu0 %v337
  %447 = vmatprep.subr.bf16.mxu0 %v342
  %448 = vmatpush1.bf16.msra.mxu0 %v341
  %449 = vmatprep.subr.bf16.mxu0 %v346
  %450 = vmatpush1.bf16.msra.mxu0 %v345
  %451 = vmatprep.subr.bf16.mxu0 %v350
  %452 = vmatpush1.bf16.msra.mxu0 %v349
  %453 = vmatprep.subr.bf16.mxu0 %v354
  %454 = vmatpush1.bf16.msra.mxu0 %v353
  %455 = vmatprep.subr.bf16.mxu0 %v358
  %456 = vmatpush1.bf16.msra.mxu0 %v357
  %457 = vmatprep.mubr.bf16.mxu0 %v98
  %458 = vmatmul.mubr.bf16.gmra.mrb[0].mxu0 %v97
  %v459 = vpop.f32.mrb[0].mxu0
  %v460 = vadd.f32 0.0, %v459
  %v461 = vpop.f32.mrb[0].mxu0
  %v462 = vadd.f32 0.0, %v461
  %v463 = vpop.f32.mrb[0].mxu0
  %v464 = vadd.f32 0.0, %v463
  %v465 = vpop.f32.mrb[0].mxu0
  %v466 = vadd.f32 0.0, %v465
  %467 = vmatprep.mubr.bf16.mxu0 %v100
  %468 = vmatmul.mubr.bf16.gmra.mrb[0].mxu0 %v99
  %v469 = vpop.f32.mrb[0].mxu0
  %v470 = vadd.f32 0.0, %v469
  %v471 = vpop.f32.mrb[0].mxu0
  %v472 = vadd.f32 0.0, %v471
  %v473 = vpop.f32.mrb[0].mxu0
  %v474 = vadd.f32 0.0, %v473
  %v475 = vpop.f32.mrb[0].mxu0
  %v476 = vadd.f32 0.0, %v475
  %477 = vdwg.mxu0
  %478 = vmatprep.subr.bf16.mxu0 %v300
  %479 = vmatpush1.bf16.msra.mxu0 %v299
  %480 = vmatprep.subr.bf16.mxu0 %v304
  %481 = vmatpush1.bf16.msra.mxu0 %v303
  %482 = vmatprep.subr.bf16.mxu0 %v308
  %483 = vmatpush1.bf16.msra.mxu0 %v307
  %484 = vmatprep.subr.bf16.mxu0 %v312
  %485 = vmatpush1.bf16.msra.mxu0 %v311
  %486 = vmatprep.subr.bf16.mxu0 %v316
  %487 = vmatpush1.bf16.msra.mxu0 %v315
  %488 = vmatprep.subr.bf16.mxu0 %v320
  %489 = vmatpush1.bf16.msra.mxu0 %v319
  %490 = vmatprep.subr.bf16.mxu0 %v324
  %491 = vmatpush1.bf16.msra.mxu0 %v323
  %492 = vmatprep.subr.bf16.mxu0 %v328
  %493 = vmatpush1.bf16.msra.mxu0 %v327
  %494 = vmatprep.subr.bf16.mxu0 %v332
  %495 = vmatpush1.bf16.msra.mxu0 %v331
  %496 = vmatprep.subr.bf16.mxu0 %v336
  %497 = vmatpush1.bf16.msra.mxu0 %v335
  %498 = vmatprep.subr.bf16.mxu0 %v340
  %499 = vmatpush1.bf16.msra.mxu0 %v339
  %500 = vmatprep.subr.bf16.mxu0 %v344
  %501 = vmatpush1.bf16.msra.mxu0 %v343
  %502 = vmatprep.subr.bf16.mxu0 %v348
  %503 = vmatpush1.bf16.msra.mxu0 %v347
  %504 = vmatprep.subr.bf16.mxu0 %v352
  %505 = vmatpush1.bf16.msra.mxu0 %v351
  %506 = vmatprep.subr.bf16.mxu0 %v356
  %507 = vmatpush1.bf16.msra.mxu0 %v355
  %508 = vmatprep.subr.bf16.mxu0 %v360
  %509 = vmatpush1.bf16.msra.mxu0 %v359
  %510 = vmatprep.mubr.bf16.mxu0 %v98
  %511 = vmatmul.mubr.bf16.gmra.mrb[0].mxu0 %v97
  %v512 = vpop.f32.mrb[0].mxu0
  %v513 = vadd.f32 0.0, %v512
  %v514 = vpop.f32.mrb[0].mxu0
  %v515 = vadd.f32 0.0, %v514
  %v516 = vpop.f32.mrb[0].mxu0
  %v517 = vadd.f32 0.0, %v516
  %v518 = vpop.f32.mrb[0].mxu0
  %v519 = vadd.f32 0.0, %v518
  %520 = vmatprep.mubr.bf16.mxu0 %v100
  %521 = vmatmul.mubr.bf16.gmra.mrb[0].mxu0 %v99
  %v522 = vpop.f32.mrb[0].mxu0
  %v523 = vadd.f32 0.0, %v522
  %v524 = vpop.f32.mrb[0].mxu0
  %v525 = vadd.f32 0.0, %v524
  %v526 = vpop.f32.mrb[0].mxu0
  %v527 = vadd.f32 0.0, %v526
  %v528 = vpop.f32.mrb[0].mxu0
  %v529 = vadd.f32 0.0, %v528
  %530 = vdwg.mxu0
  %v531 = vadd.f32 %v460, %v462
  %v532 = vadd.f32 %v531, %v513
  %v533 = vadd.f32 %v532, %v515
  %534 = vadd.xlane.f32.xlu0 %v533
  %v535 = vpop.xlane.xlu0 %534
  %v536 = vadd.f32 %v464, %v466
  %v537 = vadd.f32 %v536, %v517
  %v538 = vadd.f32 %v537, %v519
  %539 = vadd.xlane.f32.xlu0 %v538
  %v540 = vpop.xlane.xlu0 %539
  %v541 = vadd.f32 %v470, %v472
  %v542 = vadd.f32 %v541, %v523
  %v543 = vadd.f32 %v542, %v525
  %544 = vadd.xlane.f32.xlu0 %v543
  %v545 = vpop.xlane.xlu0 %544
  %v546 = vadd.f32 %v474, %v476
  %v547 = vadd.f32 %v546, %v527
  %v548 = vadd.f32 %v547, %v529
  %549 = vadd.xlane.f32.xlu0 %v548
  %v550 = vpop.xlane.xlu0 %549
  %v551 = vmul.f32 %v535, 0.001953125
  %v552 = vmul.f32 %v540, 0.001953125
  %v553 = vmul.f32 %v545, 0.001953125
  %v554 = vmul.f32 %v550, 0.001953125
  %v555 = vsub.f32 %v460, %v551
  %v556 = vsub.f32 %v462, %v551
  %v557 = vsub.f32 %v513, %v551
  %v558 = vsub.f32 %v515, %v551
  %v559 = vsub.f32 %v464, %v552
  %v560 = vsub.f32 %v466, %v552
  %v561 = vsub.f32 %v517, %v552
  %v562 = vsub.f32 %v519, %v552
  %v563 = vsub.f32 %v470, %v553
  %v564 = vsub.f32 %v472, %v553
  %v565 = vsub.f32 %v523, %v553
  %v566 = vsub.f32 %v525, %v553
  %v567 = vsub.f32 %v474, %v554
  %v568 = vsub.f32 %v476, %v554
  %v569 = vsub.f32 %v527, %v554
  %v570 = vsub.f32 %v529, %v554
  %v571 = vmul.f32 %v555, %v555
  %v572 = vmul.f32 %v556, %v556
  %v573 = vmul.f32 %v557, %v557
  %v574 = vmul.f32 %v558, %v558
  %v575 = vmul.f32 %v559, %v559
  %v576 = vmul.f32 %v560, %v560
  %v577 = vmul.f32 %v561, %v561
  %v578 = vmul.f32 %v562, %v562
  %v579 = vmul.f32 %v563, %v563
  %v580 = vmul.f32 %v564, %v564
  %v581 = vmul.f32 %v565, %v565
  %v582 = vmul.f32 %v566, %v566
  %v583 = vmul.f32 %v567, %v567
  %v584 = vmul.f32 %v568, %v568
  %v585 = vmul.f32 %v569, %v569
  %v586 = vmul.f32 %v570, %v570
  %v587 = vadd.f32 %v571, %v572
  %v588 = vadd.f32 %v587, %v573
  %v589 = vadd.f32 %v588, %v574
  %590 = vadd.xlane.f32.xlu0 %v589
  %v591 = vpop.xlane.xlu0 %590
  %v592 = vadd.f32 %v575, %v576
  %v593 = vadd.f32 %v592, %v577
  %v594 = vadd.f32 %v593, %v578
  %595 = vadd.xlane.f32.xlu0 %v594
  %v596 = vpop.xlane.xlu0 %595
  %v597 = vadd.f32 %v579, %v580
  %v598 = vadd.f32 %v597, %v581
  %v599 = vadd.f32 %v598, %v582
  %600 = vadd.xlane.f32.xlu0 %v599
  %v601 = vpop.xlane.xlu0 %600
  %v602 = vadd.f32 %v583, %v584
  %v603 = vadd.f32 %v602, %v585
  %v604 = vadd.f32 %v603, %v586
  %605 = vadd.xlane.f32.xlu0 %v604
  %v606 = vpop.xlane.xlu0 %605
  %v607 = vmul.f32 %v591, 0.001953125
  %v608 = vmul.f32 %v596, 0.001953125
  %v609 = vmul.f32 %v601, 0.001953125
  %v610 = vmul.f32 %v606, 0.001953125
  %v611 = vld [vmem:[%s2] sm:$0xff]
  %v612 = vld [vmem:[%s2 + $0x8] sm:$0xff]
  %v613 = vld [vmem:[%s2 + $0x10] sm:$0xff]
  %v614 = vld [vmem:[%s2 + $0x18] sm:$0xff]
  %v615 = vadd.f32 %v607, 1e-05
  %v616 = vadd.f32 %v608, 1e-05
  %v617 = vadd.f32 %v609, 1e-05
  %v618 = vadd.f32 %v610, 1e-05
  %v619 = vrsqrt.pop %v615
  %v620 = vrsqrt.pop %v616
  %v621 = vrsqrt.pop %v617
  %v622 = vrsqrt.pop %v618
  %v623 = vmul.f32 %v611, %v619
  %v624 = vmul.f32 %v612, %v620
  %v625 = vmul.f32 %v613, %v621
  %v626 = vmul.f32 %v614, %v622
  %628 = vset.pattern.permute.xlu0 0
  %629 = vperm.xlu0 %628, %v623
  %v630 = vpop.permute.xlu0 %629
  %633 = vset.pattern.permute.xlu0 0
  %634 = vperm.xlu0 %633, %v624
  %v635 = vpop.permute.xlu0 %634
  %638 = vset.pattern.permute.xlu0 0
  %639 = vperm.xlu0 %638, %v625
  %v640 = vpop.permute.xlu0 %639
  %643 = vset.pattern.permute.xlu0 0
  %644 = vperm.xlu0 %643, %v626
  %v645 = vpop.permute.xlu0 %644
  %v647 = vmul.f32 %v555, %v630
  %v648 = vmul.f32 %v556, %v630
  %v649 = vmul.f32 %v557, %v630
  %v650 = vmul.f32 %v558, %v630
  %v651 = vmul.f32 %v559, %v635
  %v652 = vmul.f32 %v560, %v635
  %v653 = vmul.f32 %v561, %v635
  %v654 = vmul.f32 %v562, %v635
  %v655 = vmul.f32 %v563, %v640
  %v656 = vmul.f32 %v564, %v640
  %v657 = vmul.f32 %v565, %v640
  %v658 = vmul.f32 %v566, %v640
  %v659 = vmul.f32 %v567, %v645
  %v660 = vmul.f32 %v568, %v645
  %v661 = vmul.f32 %v569, %v645
  %v662 = vmul.f32 %v570, %v645
  %v663 = vld [vmem:[%s3] sm:$0xff]
  %v664 = vld [vmem:[%s3 + $0x8] sm:$0xff]
  %v665 = vld [vmem:[%s3 + $0x10] sm:$0xff]
  %v666 = vld [vmem:[%s3 + $0x18] sm:$0xff]
  %668 = vset.pattern.permute.xlu0 0
  %669 = vperm.xlu0 %668, %v663
  %v670 = vpop.permute.xlu0 %669
  %673 = vset.pattern.permute.xlu0 0
  %674 = vperm.xlu0 %673, %v664
  %v675 = vpop.permute.xlu0 %674
  %678 = vset.pattern.permute.xlu0 0
  %679 = vperm.xlu0 %678, %v665
  %v680 = vpop.permute.xlu0 %679
  %683 = vset.pattern.permute.xlu0 0
  %684 = vperm.xlu0 %683, %v666
  %v685 = vpop.permute.xlu0 %684
  %v687 = vadd.f32 %v647, %v670
  %v688 = vadd.f32 %v648, %v670
  %v689 = vadd.f32 %v649, %v670
  %v690 = vadd.f32 %v650, %v670
  %v691 = vadd.f32 %v651, %v675
  %v692 = vadd.f32 %v652, %v675
  %v693 = vadd.f32 %v653, %v675
  %v694 = vadd.f32 %v654, %v675
  %v695 = vadd.f32 %v655, %v680
  %v696 = vadd.f32 %v656, %v680
  %v697 = vadd.f32 %v657, %v680
  %v698 = vadd.f32 %v658, %v680
  %v699 = vadd.f32 %v659, %v685
  %v700 = vadd.f32 %v660, %v685
  %v701 = vadd.f32 %v661, %v685
  %v702 = vadd.f32 %v662, %v685
  %v703 = vmul.f32 %v687, 0.2
  %v704 = vmul.f32 %v688, 0.2
  %v705 = vmul.f32 %v689, 0.2
  %v706 = vmul.f32 %v690, 0.2
  %v707 = vmul.f32 %v691, 0.2
  %v708 = vmul.f32 %v692, 0.2
  %v709 = vmul.f32 %v693, 0.2
  %v710 = vmul.f32 %v694, 0.2
  %v711 = vmul.f32 %v695, 0.2
  %v712 = vmul.f32 %v696, 0.2
  %v713 = vmul.f32 %v697, 0.2
  %v714 = vmul.f32 %v698, 0.2
  %v715 = vmul.f32 %v699, 0.2
  %v716 = vmul.f32 %v700, 0.2
  %v717 = vmul.f32 %v701, 0.2
  %v718 = vmul.f32 %v702, 0.2
  %v719 = vmax.f32 %v687, %v703
  %v720 = vmax.f32 %v688, %v704
  %v721 = vmax.f32 %v689, %v705
  %v722 = vmax.f32 %v690, %v706
  %v723 = vmax.f32 %v691, %v707
  %v724 = vmax.f32 %v692, %v708
  %v725 = vmax.f32 %v693, %v709
  %v726 = vmax.f32 %v694, %v710
  %v727 = vmax.f32 %v695, %v711
  %v728 = vmax.f32 %v696, %v712
  %v729 = vmax.f32 %v697, %v713
  %v730 = vmax.f32 %v698, %v714
  %v731 = vmax.f32 %v699, %v715
  %v732 = vmax.f32 %v700, %v716
  %v733 = vmax.f32 %v701, %v717
  %v734 = vmax.f32 %v702, %v718
  %v735 = vpack.c.bf16 %v723, %v719
  %v736 = vpack.c.bf16 %v724, %v720
  %v737 = vpack.c.bf16 %v725, %v721
  %v738 = vpack.c.bf16 %v726, %v722
  %v739 = vpack.c.bf16 %v731, %v727
  %v740 = vpack.c.bf16 %v732, %v728
  %v741 = vpack.c.bf16 %v733, %v729
  %v742 = vpack.c.bf16 %v734, %v730
  %v751 = vunpack.c.l.b16 %v735
  %v752 = vunpack.c.l.b16 %v736
  %v753 = vunpack.c.l.b16 %v737
  %v754 = vunpack.c.l.b16 %v738
  %v755 = vunpack.c.h.b16 %v735
  %v756 = vunpack.c.h.b16 %v736
  %v757 = vunpack.c.h.b16 %v737
  %v758 = vunpack.c.h.b16 %v738
  %v759 = vunpack.c.l.b16 %v739
  %v760 = vunpack.c.l.b16 %v740
  %v761 = vunpack.c.l.b16 %v741
  %v762 = vunpack.c.l.b16 %v742
  %v763 = vunpack.c.h.b16 %v739
  %v764 = vunpack.c.h.b16 %v740
  %v765 = vunpack.c.h.b16 %v741
  %v766 = vunpack.c.h.b16 %v742
  %v767 = vpack.c.b16 %v752, %v751
  %v768 = vpack.c.b16 %v754, %v753
  %v769 = vpack.c.b16 %v756, %v755
  %v770 = vpack.c.b16 %v758, %v757
  %v771 = vpack.c.b16 %v760, %v759
  %v772 = vpack.c.b16 %v762, %v761
  %v773 = vpack.c.b16 %v764, %v763
  %v774 = vpack.c.b16 %v766, %v765
  %783 = vst [vmem:[%s4] sm:$0xff] %v767
  %784 = vst [vmem:[%s4 + $0x8] sm:$0xff] %v768
  %785 = vst [vmem:[%s4 + $0x10] sm:$0xff] %v769
  %786 = vst [vmem:[%s4 + $0x18] sm:$0xff] %v770
  %787 = vst [vmem:[%s4 + $0x20] sm:$0xff] %v771
  %788 = vst [vmem:[%s4 + $0x28] sm:$0xff] %v772
  %789 = vst [vmem:[%s4 + $0x30] sm:$0xff] %v773
  %790 = vst [vmem:[%s4 + $0x38] sm:$0xff] %v774
  // Predicated region
  $region18: #{discriminator_forward.5} parent=0 // pred_check
    _
  $region19: #{discriminator_forward.5} parent=0 // pred_check_branch
    %792 = sbr.rel (0) target = $region21
  $region20: #{discriminator_forward.5} parent=0 // pred_region
    _
  $region21: #{discriminator_forward.5} parent=0 // pred_fallthru
    _
  // Predicated region
  $region22: #{discriminator_forward.5} parent=0 // pred_check
    _
  $region23: #{discriminator_forward.5} parent=0 // pred_check_branch
    %794 = sbr.rel (0) target = $region25
  $region24: #{discriminator_forward.5} parent=0 // pred_region
    _
  $region25: #{discriminator_forward.5} parent=0 // pred_fallthru
    _

// kernel: discriminator_forward.6
$region0: #{discriminator_forward.6}
  #allocation0 [shape = 'u32[]', space=smem, size = 0x4, offset = 0x4, fixed_abs, tag = 'smem constant byte address 0x4 - core index']
  #allocation1 [shape = 'u32[144,128]{1,0:T(1,128)}', space=vmem, size = 0x12000, scoped, tag = 'internal scratch']
  %s0 = inlined_call_operand.vmem [shape: bf16[32,512], index: 0, kind: input, shape index: {}]
  %s1 = inlined_call_operand.vmem [shape: bf16[512,128], index: 1, kind: input, shape index: {}]
  %s2 = inlined_call_operand.vmem [shape: f32[32,1], index: 2, kind: input, shape index: {}]
  %s3 = inlined_call_operand.vmem [shape: f32[32,1], index: 3, kind: input, shape index: {}]
  %s4 = inlined_call_operand.vmem [shape: bf16[32,128], index: 4, kind: output, shape index: {}]
  %s5 = sld [smem:[#allocation0]]
  $region26: #{discriminator_forward.6} parent=0
    _
  %s7 = ssub.s32 1, %s5
  %s8 = scalar_select 0, %s7, %s5
  // Predicated region
  $region2: #{discriminator_forward.6} parent=0 // pred_check
    _
  $region3: #{discriminator_forward.6} parent=0 // pred_check_branch
    %10 = sbr.rel (0) target = $region5
  $region4: #{discriminator_forward.6} parent=0 // pred_region
    _
  $region5: #{discriminator_forward.6} parent=0 // pred_fallthru
    _
  // Predicated region
  $region6: #{discriminator_forward.6} parent=0 // pred_check
    _
  $region7: #{discriminator_forward.6} parent=0 // pred_check_branch
    %12 = sbr.rel (0) target = $region9
  $region8: #{discriminator_forward.6} parent=0 // pred_region
    _
  $region9: #{discriminator_forward.6} parent=0 // pred_fallthru
    _
  // Predicated region
  $region10: #{discriminator_forward.6} parent=0 // pred_check
    _
  $region11: #{discriminator_forward.6} parent=0 // pred_check_branch
    %14 = sbr.rel (0) target = $region13
  $region12: #{discriminator_forward.6} parent=0 // pred_region
    _
  $region13: #{discriminator_forward.6} parent=0 // pred_fallthru
    _
  // Predicated region
  $region14: #{discriminator_forward.6} parent=0 // pred_check
    _
  $region15: #{discriminator_forward.6} parent=0 // pred_check_branch
    %16 = sbr.rel (0) target = $region17
  $region16: #{discriminator_forward.6} parent=0 // pred_region
    _
  $region17: #{discriminator_forward.6} parent=0 // pred_fallthru
    _
  %v18 = vld [vmem:[%s0] sm:$0xff]
  %v19 = vld [vmem:[%s0 + $0x8] sm:$0xff]
  %v20 = vld [vmem:[%s0 + $0x10] sm:$0xff]
  %v21 = vld [vmem:[%s0 + $0x18] sm:$0xff]
  %v22 = vld [vmem:[%s0 + $0x20] sm:$0xff]
  %v23 = vld [vmem:[%s0 + $0x28] sm:$0xff]
  %v24 = vld [vmem:[%s0 + $0x30] sm:$0xff]
  %v25 = vld [vmem:[%s0 + $0x38] sm:$0xff]
  %v26 = vld [vmem:[%s1] sm:$0xf]
  %v27 = vld [vmem:[%s1 + $0x4] sm:$0xf]
  %v28 = vld [vmem:[%s1 + $0x8] sm:$0xf]
  %v29 = vld [vmem:[%s1 + $0xc] sm:$0xf]
  %v30 = vld [vmem:[%s1 + $0x10] sm:$0xf]
  %v31 = vld [vmem:[%s1 + $0x14] sm:$0xf]
  %v32 = vld [vmem:[%s1 + $0x18] sm:$0xf]
  %v33 = vld [vmem:[%s1 + $0x1c] sm:$0xf]
  %v34 = vld [vmem:[%s1 + $0x20] sm:$0xf]
  %v35 = vld [vmem:[%s1 + $0x24] sm:$0xf]
  %v36 = vld [vmem:[%s1 + $0x28] sm:$0xf]
  %v37 = vld [vmem:[%s1 + $0x2c] sm:$0xf]
  %v38 = vld [vmem:[%s1 + $0x30] sm:$0xf]
  %v39 = vld [vmem:[%s1 + $0x34] sm:$0xf]
  %v40 = vld [vmem:[%s1 + $0x38] sm:$0xf]
  %v41 = vld [vmem:[%s1 + $0x3c] sm:$0xf]
  %v42 = vld [vmem:[%s1 + $0x40] sm:$0xf]
  %v43 = vld [vmem:[%s1 + $0x44] sm:$0xf]
  %v44 = vld [vmem:[%s1 + $0x48] sm:$0xf]
  %v45 = vld [vmem:[%s1 + $0x4c] sm:$0xf]
  %v46 = vld [vmem:[%s1 + $0x50] sm:$0xf]
  %v47 = vld [vmem:[%s1 + $0x54] sm:$0xf]
  %v48 = vld [vmem:[%s1 + $0x58] sm:$0xf]
  %v49 = vld [vmem:[%s1 + $0x5c] sm:$0xf]
  %v50 = vld [vmem:[%s1 + $0x60] sm:$0xf]
  %v51 = vld [vmem:[%s1 + $0x64] sm:$0xf]
  %v52 = vld [vmem:[%s1 + $0x68] sm:$0xf]
  %v53 = vld [vmem:[%s1 + $0x6c] sm:$0xf]
  %v54 = vld [vmem:[%s1 + $0x70] sm:$0xf]
  %v55 = vld [vmem:[%s1 + $0x74] sm:$0xf]
  %v56 = vld [vmem:[%s1 + $0x78] sm:$0xf]
  %v57 = vld [vmem:[%s1 + $0x7c] sm:$0xf]
  %v58 = vld [vmem:[%s1 + $0x80] sm:$0xf]
  %v59 = vld [vmem:[%s1 + $0x84] sm:$0xf]
  %v60 = vld [vmem:[%s1 + $0x88] sm:$0xf]
  %v61 = vld [vmem:[%s1 + $0x8c] sm:$0xf]
  %v62 = vld [vmem:[%s1 + $0x90] sm:$0xf]
  %v63 = vld [vmem:[%s1 + $0x94] sm:$0xf]
  %v64 = vld [vmem:[%s1 + $0x98] sm:$0xf]
  %v65 = vld [vmem:[%s1 + $0x9c] sm:$0xf]
  %v66 = vld [vmem:[%s1 + $0xa0] sm:$0xf]
  %v67 = vld [vmem:[%s1 + $0xa4] sm:$0xf]
  %v68 = vld [vmem:[%s1 + $0xa8] sm:$0xf]
  %v69 = vld [vmem:[%s1 + $0xac] sm:$0xf]
  %v70 = vld [vmem:[%s1 + $0xb0] sm:$0xf]
  %v71 = vld [vmem:[%s1 + $0xb4] sm:$0xf]
  %v72 = vld [vmem:[%s1 + $0xb8] sm:$0xf]
  %v73 = vld [vmem:[%s1 + $0xbc] sm:$0xf]
  %v74 = vld [vmem:[%s1 + $0xc0] sm:$0xf]
  %v75 = vld [vmem:[%s1 + $0xc4] sm:$0xf]
  %v76 = vld [vmem:[%s1 + $0xc8] sm:$0xf]
  %v77 = vld [vmem:[%s1 + $0xcc] sm:$0xf]
  %v78 = vld [vmem:[%s1 + $0xd0] sm:$0xf]
  %v79 = vld [vmem:[%s1 + $0xd4] sm:$0xf]
  %v80 = vld [vmem:[%s1 + $0xd8] sm:$0xf]
  %v81 = vld [vmem:[%s1 + $0xdc] sm:$0xf]
  %v82 = vld [vmem:[%s1 + $0xe0] sm:$0xf]
  %v83 = vld [vmem:[%s1 + $0xe4] sm:$0xf]
  %v84 = vld [vmem:[%s1 + $0xe8] sm:$0xf]
  %v85 = vld [vmem:[%s1 + $0xec] sm:$0xf]
  %v86 = vld [vmem:[%s1 + $0xf0] sm:$0xf]
  %v87 = vld [vmem:[%s1 + $0xf4] sm:$0xf]
  %v88 = vld [vmem:[%s1 + $0xf8] sm:$0xf]
  %v89 = vld [vmem:[%s1 + $0xfc] sm:$0xf]
  %v98 = vunpack.c.l.b16 %v18
  %v99 = vunpack.c.h.b16 %v18
  %v100 = vunpack.c.l.b16 %v19
  %v101 = vunpack.c.h.b16 %v19
  %v102 = vunpack.c.l.b16 %v20
  %v103 = vunpack.c.h.b16 %v20
  %v104 = vunpack.c.l.b16 %v21
  %v105 = vunpack.c.h.b16 %v21
  %v106 = vunpack.c.l.b16 %v22
  %v107 = vunpack.c.h.b16 %v22
  %v108 = vunpack.c.l.b16 %v23
  %v109 = vunpack.c.h.b16 %v23
  %v110 = vunpack.c.l.b16 %v24
  %v111 = vunpack.c.h.b16 %v24
  %v112 = vunpack.c.l.b16 %v25
  %v113 = vunpack.c.h.b16 %v25
  %v114 = vpack.c.b16 %v102, %v98
  %v115 = vpack.c.b16 %v103, %v99
  %v116 = vpack.c.b16 %v104, %v100
  %v117 = vpack.c.b16 %v105, %v101
  %v118 = vpack.c.b16 %v110, %v106
  %v119 = vpack.c.b16 %v111, %v107
  %v120 = vpack.c.b16 %v112, %v108
  %v121 = vpack.c.b16 %v113, %v109
  %v194 = vunpack.c.l.b16 %v26
  %v195 = vunpack.c.l.b16 %v27
  %v196 = vunpack.c.l.b16 %v28
  %v197 = vunpack.c.l.b16 %v29
  %v198 = vunpack.c.l.b16 %v30
  %v199 = vunpack.c.l.b16 %v31
  %v200 = vunpack.c.l.b16 %v32
  %v201 = vunpack.c.l.b16 %v33
  %v202 = vunpack.c.l.b16 %v34
  %v203 = vunpack.c.l.b16 %v35
  %v204 = vunpack.c.l.b16 %v36
  %v205 = vunpack.c.l.b16 %v37
  %v206 = vunpack.c.l.b16 %v38
  %v207 = vunpack.c.l.b16 %v39
  %v208 = vunpack.c.l.b16 %v40
  %v209 = vunpack.c.l.b16 %v41
  %v210 = vunpack.c.l.b16 %v42
  %v211 = vunpack.c.l.b16 %v43
  %v212 = vunpack.c.l.b16 %v44
  %v213 = vunpack.c.l.b16 %v45
  %v214 = vunpack.c.l.b16 %v46
  %v215 = vunpack.c.l.b16 %v47
  %v216 = vunpack.c.l.b16 %v48
  %v217 = vunpack.c.l.b16 %v49
  %v218 = vunpack.c.l.b16 %v50
  %v219 = vunpack.c.l.b16 %v51
  %v220 = vunpack.c.l.b16 %v52
  %v221 = vunpack.c.l.b16 %v53
  %v222 = vunpack.c.l.b16 %v54
  %v223 = vunpack.c.l.b16 %v55
  %v224 = vunpack.c.l.b16 %v56
  %v225 = vunpack.c.l.b16 %v57
  %v226 = vunpack.c.l.b16 %v58
  %v227 = vunpack.c.l.b16 %v59
  %v228 = vunpack.c.l.b16 %v60
  %v229 = vunpack.c.l.b16 %v61
  %v230 = vunpack.c.l.b16 %v62
  %v231 = vunpack.c.l.b16 %v63
  %v232 = vunpack.c.l.b16 %v64
  %v233 = vunpack.c.l.b16 %v65
  %v234 = vunpack.c.l.b16 %v66
  %v235 = vunpack.c.l.b16 %v67
  %v236 = vunpack.c.l.b16 %v68
  %v237 = vunpack.c.l.b16 %v69
  %v238 = vunpack.c.l.b16 %v70
  %v239 = vunpack.c.l.b16 %v71
  %v240 = vunpack.c.l.b16 %v72
  %v241 = vunpack.c.l.b16 %v73
  %v242 = vunpack.c.l.b16 %v74
  %v243 = vunpack.c.l.b16 %v75
  %v244 = vunpack.c.l.b16 %v76
  %v245 = vunpack.c.l.b16 %v77
  %v246 = vunpack.c.l.b16 %v78
  %v247 = vunpack.c.l.b16 %v79
  %v248 = vunpack.c.l.b16 %v80
  %v249 = vunpack.c.l.b16 %v81
  %v250 = vunpack.c.l.b16 %v82
  %v251 = vunpack.c.l.b16 %v83
  %v252 = vunpack.c.l.b16 %v84
  %v253 = vunpack.c.l.b16 %v85
  %v254 = vunpack.c.l.b16 %v86
  %v255 = vunpack.c.l.b16 %v87
  %v256 = vunpack.c.l.b16 %v88
  %v257 = vunpack.c.l.b16 %v89
  %v258 = vpack.c.b16 %v195, %v194
  %v259 = vpack.c.b16 %v197, %v196
  %v260 = vpack.c.b16 %v199, %v198
  %v261 = vpack.c.b16 %v201, %v200
  %v262 = vpack.c.b16 %v203, %v202
  %v263 = vpack.c.b16 %v205, %v204
  %v264 = vpack.c.b16 %v207, %v206
  %v265 = vpack.c.b16 %v209, %v208
  %v266 = vpack.c.b16 %v211, %v210
  %v267 = vpack.c.b16 %v213, %v212
  %v268 = vpack.c.b16 %v215, %v214
  %v269 = vpack.c.b16 %v217, %v216
  %v270 = vpack.c.b16 %v219, %v218
  %v271 = vpack.c.b16 %v221, %v220
  %v272 = vpack.c.b16 %v223, %v222
  %v273 = vpack.c.b16 %v225, %v224
  %v274 = vpack.c.b16 %v227, %v226
  %v275 = vpack.c.b16 %v229, %v228
  %v276 = vpack.c.b16 %v231, %v230
  %v277 = vpack.c.b16 %v233, %v232
  %v278 = vpack.c.b16 %v235, %v234
  %v279 = vpack.c.b16 %v237, %v236
  %v280 = vpack.c.b16 %v239, %v238
  %v281 = vpack.c.b16 %v241, %v240
  %v282 = vpack.c.b16 %v243, %v242
  %v283 = vpack.c.b16 %v245, %v244
  %v284 = vpack.c.b16 %v247, %v246
  %v285 = vpack.c.b16 %v249, %v248
  %v286 = vpack.c.b16 %v251, %v250
  %v287 = vpack.c.b16 %v253, %v252
  %v288 = vpack.c.b16 %v255, %v254
  %v289 = vpack.c.b16 %v257, %v256
  %322 = vmatprep.subr.bf16.mxu0 0
  %323 = vmatpush1.bf16.msra.mxu0 %v258
  %324 = vmatprep.subr.bf16.mxu0 0
  %325 = vmatpush1.bf16.msra.mxu0 %v259
  %326 = vmatprep.subr.bf16.mxu0 0
  %327 = vmatpush1.bf16.msra.mxu0 %v260
  %328 = vmatprep.subr.bf16.mxu0 0
  %329 = vmatpush1.bf16.msra.mxu0 %v261
  %330 = vmatprep.subr.bf16.mxu0 0
  %331 = vmatpush1.bf16.msra.mxu0 %v262
  %332 = vmatprep.subr.bf16.mxu0 0
  %333 = vmatpush1.bf16.msra.mxu0 %v263
  %334 = vmatprep.subr.bf16.mxu0 0
  %335 = vmatpush1.bf16.msra.mxu0 %v264
  %336 = vmatprep.subr.bf16.mxu0 0
  %337 = vmatpush1.bf16.msra.mxu0 %v265
  %338 = vmatprep.subr.bf16.mxu0 0
  %339 = vmatpush1.bf16.msra.mxu0 %v266
  %340 = vmatprep.subr.bf16.mxu0 0
  %341 = vmatpush1.bf16.msra.mxu0 %v267
  %342 = vmatprep.subr.bf16.mxu0 0
  %343 = vmatpush1.bf16.msra.mxu0 %v268
  %344 = vmatprep.subr.bf16.mxu0 0
  %345 = vmatpush1.bf16.msra.mxu0 %v269
  %346 = vmatprep.subr.bf16.mxu0 0
  %347 = vmatpush1.bf16.msra.mxu0 %v270
  %348 = vmatprep.subr.bf16.mxu0 0
  %349 = vmatpush1.bf16.msra.mxu0 %v271
  %350 = vmatprep.subr.bf16.mxu0 0
  %351 = vmatpush1.bf16.msra.mxu0 %v272
  %352 = vmatprep.subr.bf16.mxu0 0
  %353 = vmatpush1.bf16.msra.mxu0 %v273
  %354 = vmatprep.mubr.bf16.mxu0 %v115
  %355 = vmatmul.mubr.bf16.gmra.mrb[0].mxu0 %v114
  %v356 = vpop.f32.mrb[0].mxu0
  %v357 = vadd.f32 0.0, %v356
  %v358 = vpop.f32.mrb[0].mxu0
  %v359 = vpop.f32.mrb[0].mxu0
  %v360 = vadd.f32 0.0, %v359
  %v361 = vpop.f32.mrb[0].mxu0
  %362 = vmatprep.mubr.bf16.mxu0 %v119
  %363 = vmatmul.mubr.bf16.gmra.mrb[0].mxu0 %v118
  %v364 = vpop.f32.mrb[0].mxu0
  %v365 = vadd.f32 0.0, %v364
  %v366 = vpop.f32.mrb[0].mxu0
  %v367 = vpop.f32.mrb[0].mxu0
  %v368 = vadd.f32 0.0, %v367
  %v369 = vpop.f32.mrb[0].mxu0
  %370 = vdwg.mxu0
  %371 = vmatprep.subr.bf16.mxu0 0
  %372 = vmatpush1.bf16.msra.mxu0 %v274
  %373 = vmatprep.subr.bf16.mxu0 0
  %374 = vmatpush1.bf16.msra.mxu0 %v275
  %375 = vmatprep.subr.bf16.mxu0 0
  %376 = vmatpush1.bf16.msra.mxu0 %v276
  %377 = vmatprep.subr.bf16.mxu0 0
  %378 = vmatpush1.bf16.msra.mxu0 %v277
  %379 = vmatprep.subr.bf16.mxu0 0
  %380 = vmatpush1.bf16.msra.mxu0 %v278
  %381 = vmatprep.subr.bf16.mxu0 0
  %382 = vmatpush1.bf16.msra.mxu0 %v279
  %383 = vmatprep.subr.bf16.mxu0 0
  %384 = vmatpush1.bf16.msra.mxu0 %v280
  %385 = vmatprep.subr.bf16.mxu0 0
  %386 = vmatpush1.bf16.msra.mxu0 %v281
  %387 = vmatprep.subr.bf16.mxu0 0
  %388 = vmatpush1.bf16.msra.mxu0 %v282
  %389 = vmatprep.subr.bf16.mxu0 0
  %390 = vmatpush1.bf16.msra.mxu0 %v283
  %391 = vmatprep.subr.bf16.mxu0 0
  %392 = vmatpush1.bf16.msra.mxu0 %v284
  %393 = vmatprep.subr.bf16.mxu0 0
  %394 = vmatpush1.bf16.msra.mxu0 %v285
  %395 = vmatprep.subr.bf16.mxu0 0
  %396 = vmatpush1.bf16.msra.mxu0 %v286
  %397 = vmatprep.subr.bf16.mxu0 0
  %398 = vmatpush1.bf16.msra.mxu0 %v287
  %399 = vmatprep.subr.bf16.mxu0 0
  %400 = vmatpush1.bf16.msra.mxu0 %v288
  %401 = vmatprep.subr.bf16.mxu0 0
  %402 = vmatpush1.bf16.msra.mxu0 %v289
  %403 = vmatprep.mubr.bf16.mxu0 %v117
  %404 = vmatmul.mubr.bf16.gmra.mrb[0].mxu0 %v116
  %v405 = vpop.f32.mrb[0].mxu0
  %v406 = vadd.f32 %v357, %v405
  %v407 = vpop.f32.mrb[0].mxu0
  %v408 = vpop.f32.mrb[0].mxu0
  %v409 = vadd.f32 %v360, %v408
  %v410 = vpop.f32.mrb[0].mxu0
  %411 = vmatprep.mubr.bf16.mxu0 %v121
  %412 = vmatmul.mubr.bf16.gmra.mrb[0].mxu0 %v120
  %v413 = vpop.f32.mrb[0].mxu0
  %v414 = vadd.f32 %v365, %v413
  %v415 = vpop.f32.mrb[0].mxu0
  %v416 = vpop.f32.mrb[0].mxu0
  %v417 = vadd.f32 %v368, %v416
  %v418 = vpop.f32.mrb[0].mxu0
  %419 = vdwg.mxu0
  %420 = vadd.xlane.f32.xlu0 %v406
  %v421 = vpop.xlane.xlu0 %420
  %422 = vadd.xlane.f32.xlu0 %v409
  %v423 = vpop.xlane.xlu0 %422
  %424 = vadd.xlane.f32.xlu0 %v414
  %v425 = vpop.xlane.xlu0 %424
  %426 = vadd.xlane.f32.xlu0 %v417
  %v427 = vpop.xlane.xlu0 %426
  %v428 = vmul.f32 %v421, 0.0078125
  %v429 = vmul.f32 %v423, 0.0078125
  %v430 = vmul.f32 %v425, 0.0078125
  %v431 = vmul.f32 %v427, 0.0078125
  %v432 = vsub.f32 %v406, %v428
  %v433 = vsub.f32 %v409, %v429
  %v434 = vsub.f32 %v414, %v430
  %v435 = vsub.f32 %v417, %v431
  %v436 = vmul.f32 %v432, %v432
  %v437 = vmul.f32 %v433, %v433
  %v438 = vmul.f32 %v434, %v434
  %v439 = vmul.f32 %v435, %v435
  %440 = vadd.xlane.f32.xlu0 %v436
  %v441 = vpop.xlane.xlu0 %440
  %442 = vadd.xlane.f32.xlu0 %v437
  %v443 = vpop.xlane.xlu0 %442
  %444 = vadd.xlane.f32.xlu0 %v438
  %v445 = vpop.xlane.xlu0 %444
  %446 = vadd.xlane.f32.xlu0 %v439
  %v447 = vpop.xlane.xlu0 %446
  %v448 = vmul.f32 %v441, 0.0078125
  %v449 = vmul.f32 %v443, 0.0078125
  %v450 = vmul.f32 %v445, 0.0078125
  %v451 = vmul.f32 %v447, 0.0078125
  %v452 = vld [vmem:[%s2] sm:$0xff]
  %v453 = vld [vmem:[%s2 + $0x8] sm:$0xff]
  %v454 = vld [vmem:[%s2 + $0x10] sm:$0xff]
  %v455 = vld [vmem:[%s2 + $0x18] sm:$0xff]
  %v456 = vadd.f32 %v448, 1e-05
  %v457 = vadd.f32 %v449, 1e-05
  %v458 = vadd.f32 %v450, 1e-05
  %v459 = vadd.f32 %v451, 1e-05
  %v460 = vrsqrt.pop %v456
  %v461 = vrsqrt.pop %v457
  %v462 = vrsqrt.pop %v458
  %v463 = vrsqrt.pop %v459
  %v464 = vmul.f32 %v452, %v460
  %v465 = vmul.f32 %v453, %v461
  %v466 = vmul.f32 %v454, %v462
  %v467 = vmul.f32 %v455, %v463
  %469 = vset.pattern.permute.xlu0 0
  %470 = vperm.xlu0 %469, %v464
  %v471 = vpop.permute.xlu0 %470
  %474 = vset.pattern.permute.xlu0 0
  %475 = vperm.xlu0 %474, %v465
  %v476 = vpop.permute.xlu0 %475
  %479 = vset.pattern.permute.xlu0 0
  %480 = vperm.xlu0 %479, %v466
  %v481 = vpop.permute.xlu0 %480
  %484 = vset.pattern.permute.xlu0 0
  %485 = vperm.xlu0 %484, %v467
  %v486 = vpop.permute.xlu0 %485
  %v488 = vmul.f32 %v432, %v471
  %v489 = vmul.f32 %v433, %v476
  %v490 = vmul.f32 %v434, %v481
  %v491 = vmul.f32 %v435, %v486
  %v492 = vld [vmem:[%s3] sm:$0xff]
  %v493 = vld [vmem:[%s3 + $0x8] sm:$0xff]
  %v494 = vld [vmem:[%s3 + $0x10] sm:$0xff]
  %v495 = vld [vmem:[%s3 + $0x18] sm:$0xff]
  %497 = vset.pattern.permute.xlu0 0
  %498 = vperm.xlu0 %497, %v492
  %v499 = vpop.permute.xlu0 %498
  %502 = vset.pattern.permute.xlu0 0
  %503 = vperm.xlu0 %502, %v493
  %v504 = vpop.permute.xlu0 %503
  %507 = vset.pattern.permute.xlu0 0
  %508 = vperm.xlu0 %507, %v494
  %v509 = vpop.permute.xlu0 %508
  %512 = vset.pattern.permute.xlu0 0
  %513 = vperm.xlu0 %512, %v495
  %v514 = vpop.permute.xlu0 %513
  %v516 = vadd.f32 %v488, %v499
  %v517 = vadd.f32 %v489, %v504
  %v518 = vadd.f32 %v490, %v509
  %v519 = vadd.f32 %v491, %v514
  %v520 = vmul.f32 %v516, 0.2
  %v521 = vmul.f32 %v517, 0.2
  %v522 = vmul.f32 %v518, 0.2
  %v523 = vmul.f32 %v519, 0.2
  %v524 = vmax.f32 %v516, %v520
  %v525 = vmax.f32 %v517, %v521
  %v526 = vmax.f32 %v518, %v522
  %v527 = vmax.f32 %v519, %v523
  %v528 = vpack.c.bf16 %v525, %v524
  %v529 = vpack.c.bf16 %v527, %v526
  %v532 = vunpack.c.l.b16 %v528
  %v533 = vunpack.c.h.b16 %v528
  %v534 = vunpack.c.l.b16 %v529
  %v535 = vunpack.c.h.b16 %v529
  %v536 = vpack.c.b16 %v532, %v532
  %v537 = vpack.c.b16 %v533, %v533
  %v538 = vpack.c.b16 %v534, %v534
  %v539 = vpack.c.b16 %v535, %v535
  %544 = vst [vmem:[%s4] sm:$0xf] %v536
  %545 = vst [vmem:[%s4 + $0x4] sm:$0xf] %v537
  %546 = vst [vmem:[%s4 + $0x8] sm:$0xf] %v538
  %547 = vst [vmem:[%s4 + $0xc] sm:$0xf] %v539
  // Predicated region
  $region18: #{discriminator_forward.6} parent=0 // pred_check
    _
  $region19: #{discriminator_forward.6} parent=0 // pred_check_branch
    %549 = sbr.rel (0) target = $region21
  $region20: #{discriminator_forward.6} parent=0 // pred_region
    _
  $region21: #{discriminator_forward.6} parent=0 // pred_fallthru
    _
  // Predicated region
  $region22: #{discriminator_forward.6} parent=0 // pred_check
    _
  $region23: #{discriminator_forward.6} parent=0 // pred_check_branch
    %551 = sbr.rel (0) target = $region25
  $region24: #{discriminator_forward.6} parent=0 // pred_region
    _
  $region25: #{discriminator_forward.6} parent=0 // pred_fallthru
    _

// kernel: discriminator_forward.7
$region0: #{discriminator_forward.7}
  #allocation0 [shape = 'u32[]', space=smem, size = 0x4, offset = 0x4, fixed_abs, tag = 'smem constant byte address 0x4 - core index']
  #allocation1 [shape = 'u32[144,128]{1,0:T(1,128)}', space=vmem, size = 0x12000, scoped, tag = 'internal scratch']
  %s0 = inlined_call_operand.vmem [shape: bf16[64,512], index: 0, kind: input, shape index: {}]
  %s1 = inlined_call_operand.vmem [shape: bf16[512,32], index: 1, kind: input, shape index: {}]
  %s2 = inlined_call_operand.vmem [shape: f32[64,1], index: 2, kind: input, shape index: {}]
  %s3 = inlined_call_operand.vmem [shape: f32[64,1], index: 3, kind: input, shape index: {}]
  %s4 = inlined_call_operand.vmem [shape: bf16[64,32], index: 4, kind: output, shape index: {}]
  %s5 = sld [smem:[#allocation0]]
  $region26: #{discriminator_forward.7} parent=0
    _
  %s7 = ssub.s32 1, %s5
  %s8 = scalar_select 0, %s7, %s5
  // Predicated region
  $region2: #{discriminator_forward.7} parent=0 // pred_check
    _
  $region3: #{discriminator_forward.7} parent=0 // pred_check_branch
    %10 = sbr.rel (0) target = $region5
  $region4: #{discriminator_forward.7} parent=0 // pred_region
    _
  $region5: #{discriminator_forward.7} parent=0 // pred_fallthru
    _
  // Predicated region
  $region6: #{discriminator_forward.7} parent=0 // pred_check
    _
  $region7: #{discriminator_forward.7} parent=0 // pred_check_branch
    %12 = sbr.rel (0) target = $region9
  $region8: #{discriminator_forward.7} parent=0 // pred_region
    _
  $region9: #{discriminator_forward.7} parent=0 // pred_fallthru
    _
  // Predicated region
  $region10: #{discriminator_forward.7} parent=0 // pred_check
    _
  $region11: #{discriminator_forward.7} parent=0 // pred_check_branch
    %14 = sbr.rel (0) target = $region13
  $region12: #{discriminator_forward.7} parent=0 // pred_region
    _
  $region13: #{discriminator_forward.7} parent=0 // pred_fallthru
    _
  // Predicated region
  $region14: #{discriminator_forward.7} parent=0 // pred_check
    _
  $region15: #{discriminator_forward.7} parent=0 // pred_check_branch
    %16 = sbr.rel (0) target = $region17
  $region16: #{discriminator_forward.7} parent=0 // pred_region
    _
  $region17: #{discriminator_forward.7} parent=0 // pred_fallthru
    _
  %v18 = vld [vmem:[%s0] sm:$0xff]
  %v19 = vld [vmem:[%s0 + $0x8] sm:$0xff]
  %v20 = vld [vmem:[%s0 + $0x10] sm:$0xff]
  %v21 = vld [vmem:[%s0 + $0x18] sm:$0xff]
  %v22 = vld [vmem:[%s0 + $0x20] sm:$0xff]
  %v23 = vld [vmem:[%s0 + $0x28] sm:$0xff]
  %v24 = vld [vmem:[%s0 + $0x30] sm:$0xff]
  %v25 = vld [vmem:[%s0 + $0x38] sm:$0xff]
  %v26 = vld [vmem:[%s0 + $0x40] sm:$0xff]
  %v27 = vld [vmem:[%s0 + $0x48] sm:$0xff]
  %v28 = vld [vmem:[%s0 + $0x50] sm:$0xff]
  %v29 = vld [vmem:[%s0 + $0x58] sm:$0xff]
  %v30 = vld [vmem:[%s0 + $0x60] sm:$0xff]
  %v31 = vld [vmem:[%s0 + $0x68] sm:$0xff]
  %v32 = vld [vmem:[%s0 + $0x70] sm:$0xff]
  %v33 = vld [vmem:[%s0 + $0x78] sm:$0xff]
  %v34 = vld [vmem:[%s1] sm:$0xf]
  %v35 = vld [vmem:[%s1 + $0x4] sm:$0xf]
  %v36 = vld [vmem:[%s1 + $0x8] sm:$0xf]
  %v37 = vld [vmem:[%s1 + $0xc] sm:$0xf]
  %v38 = vld [vmem:[%s1 + $0x10] sm:$0xf]
  %v39 = vld [vmem:[%s1 + $0x14] sm:$0xf]
  %v40 = vld [vmem:[%s1 + $0x18] sm:$0xf]
  %v41 = vld [vmem:[%s1 + $0x1c] sm:$0xf]
  %v42 = vld [vmem:[%s1 + $0x20] sm:$0xf]
  %v43 = vld [vmem:[%s1 + $0x24] sm:$0xf]
  %v44 = vld [vmem:[%s1 + $0x28] sm:$0xf]
  %v45 = vld [vmem:[%s1 + $0x2c] sm:$0xf]
  %v46 = vld [vmem:[%s1 + $0x30] sm:$0xf]
  %v47 = vld [vmem:[%s1 + $0x34] sm:$0xf]
  %v48 = vld [vmem:[%s1 + $0x38] sm:$0xf]
  %v49 = vld [vmem:[%s1 + $0x3c] sm:$0xf]
  %v50 = vld [vmem:[%s1 + $0x40] sm:$0xf]
  %v51 = vld [vmem:[%s1 + $0x44] sm:$0xf]
  %v52 = vld [vmem:[%s1 + $0x48] sm:$0xf]
  %v53 = vld [vmem:[%s1 + $0x4c] sm:$0xf]
  %v54 = vld [vmem:[%s1 + $0x50] sm:$0xf]
  %v55 = vld [vmem:[%s1 + $0x54] sm:$0xf]
  %v56 = vld [vmem:[%s1 + $0x58] sm:$0xf]
  %v57 = vld [vmem:[%s1 + $0x5c] sm:$0xf]
  %v58 = vld [vmem:[%s1 + $0x60] sm:$0xf]
  %v59 = vld [vmem:[%s1 + $0x64] sm:$0xf]
  %v60 = vld [vmem:[%s1 + $0x68] sm:$0xf]
  %v61 = vld [vmem:[%s1 + $0x6c] sm:$0xf]
  %v62 = vld [vmem:[%s1 + $0x70] sm:$0xf]
  %v63 = vld [vmem:[%s1 + $0x74] sm:$0xf]
  %v64 = vld [vmem:[%s1 + $0x78] sm:$0xf]
  %v65 = vld [vmem:[%s1 + $0x7c] sm:$0xf]
  %v66 = vld [vmem:[%s1 + $0x80] sm:$0xf]
  %v67 = vld [vmem:[%s1 + $0x84] sm:$0xf]
  %v68 = vld [vmem:[%s1 + $0x88] sm:$0xf]
  %v69 = vld [vmem:[%s1 + $0x8c] sm:$0xf]
  %v70 = vld [vmem:[%s1 + $0x90] sm:$0xf]
  %v71 = vld [vmem:[%s1 + $0x94] sm:$0xf]
  %v72 = vld [vmem:[%s1 + $0x98] sm:$0xf]
  %v73 = vld [vmem:[%s1 + $0x9c] sm:$0xf]
  %v74 = vld [vmem:[%s1 + $0xa0] sm:$0xf]
  %v75 = vld [vmem:[%s1 + $0xa4] sm:$0xf]
  %v76 = vld [vmem:[%s1 + $0xa8] sm:$0xf]
  %v77 = vld [vmem:[%s1 + $0xac] sm:$0xf]
  %v78 = vld [vmem:[%s1 + $0xb0] sm:$0xf]
  %v79 = vld [vmem:[%s1 + $0xb4] sm:$0xf]
  %v80 = vld [vmem:[%s1 + $0xb8] sm:$0xf]
  %v81 = vld [vmem:[%s1 + $0xbc] sm:$0xf]
  %v82 = vld [vmem:[%s1 + $0xc0] sm:$0xf]
  %v83 = vld [vmem:[%s1 + $0xc4] sm:$0xf]
  %v84 = vld [vmem:[%s1 + $0xc8] sm:$0xf]
  %v85 = vld [vmem:[%s1 + $0xcc] sm:$0xf]
  %v86 = vld [vmem:[%s1 + $0xd0] sm:$0xf]
  %v87 = vld [vmem:[%s1 + $0xd4] sm:$0xf]
  %v88 = vld [vmem:[%s1 + $0xd8] sm:$0xf]
  %v89 = vld [vmem:[%s1 + $0xdc] sm:$0xf]
  %v90 = vld [vmem:[%s1 + $0xe0] sm:$0xf]
  %v91 = vld [vmem:[%s1 + $0xe4] sm:$0xf]
  %v92 = vld [vmem:[%s1 + $0xe8] sm:$0xf]
  %v93 = vld [vmem:[%s1 + $0xec] sm:$0xf]
  %v94 = vld [vmem:[%s1 + $0xf0] sm:$0xf]
  %v95 = vld [vmem:[%s1 + $0xf4] sm:$0xf]
  %v96 = vld [vmem:[%s1 + $0xf8] sm:$0xf]
  %v97 = vld [vmem:[%s1 + $0xfc] sm:$0xf]
  %v114 = vunpack.c.l.b16 %v18
  %v115 = vunpack.c.h.b16 %v18
  %v116 = vunpack.c.l.b16 %v19
  %v117 = vunpack.c.h.b16 %v19
  %v118 = vunpack.c.l.b16 %v20
  %v119 = vunpack.c.h.b16 %v20
  %v120 = vunpack.c.l.b16 %v21
  %v121 = vunpack.c.h.b16 %v21
  %v122 = vunpack.c.l.b16 %v22
  %v123 = vunpack.c.h.b16 %v22
  %v124 = vunpack.c.l.b16 %v23
  %v125 = vunpack.c.h.b16 %v23
  %v126 = vunpack.c.l.b16 %v24
  %v127 = vunpack.c.h.b16 %v24
  %v128 = vunpack.c.l.b16 %v25
  %v129 = vunpack.c.h.b16 %v25
  %v130 = vunpack.c.l.b16 %v26
  %v131 = vunpack.c.h.b16 %v26
  %v132 = vunpack.c.l.b16 %v27
  %v133 = vunpack.c.h.b16 %v27
  %v134 = vunpack.c.l.b16 %v28
  %v135 = vunpack.c.h.b16 %v28
  %v136 = vunpack.c.l.b16 %v29
  %v137 = vunpack.c.h.b16 %v29
  %v138 = vunpack.c.l.b16 %v30
  %v139 = vunpack.c.h.b16 %v30
  %v140 = vunpack.c.l.b16 %v31
  %v141 = vunpack.c.h.b16 %v31
  %v142 = vunpack.c.l.b16 %v32
  %v143 = vunpack.c.h.b16 %v32
  %v144 = vunpack.c.l.b16 %v33
  %v145 = vunpack.c.h.b16 %v33
  %v146 = vpack.c.b16 %v118, %v114
  %v147 = vpack.c.b16 %v119, %v115
  %v148 = vpack.c.b16 %v120, %v116
  %v149 = vpack.c.b16 %v121, %v117
  %v150 = vpack.c.b16 %v126, %v122
  %v151 = vpack.c.b16 %v127, %v123
  %v152 = vpack.c.b16 %v128, %v124
  %v153 = vpack.c.b16 %v129, %v125
  %v154 = vpack.c.b16 %v134, %v130
  %v155 = vpack.c.b16 %v135, %v131
  %v156 = vpack.c.b16 %v136, %v132
  %v157 = vpack.c.b16 %v137, %v133
  %v158 = vpack.c.b16 %v142, %v138
  %v159 = vpack.c.b16 %v143, %v139
  %v160 = vpack.c.b16 %v144, %v140
  %v161 = vpack.c.b16 %v145, %v141
  %v242 = vunpack.c.l.b16 %v34
  %v243 = vunpack.c.l.b16 %v35
  %v244 = vunpack.c.l.b16 %v36
  %v245 = vunpack.c.l.b16 %v37
  %v246 = vunpack.c.l.b16 %v38
  %v247 = vunpack.c.l.b16 %v39
  %v248 = vunpack.c.l.b16 %v40
  %v249 = vunpack.c.l.b16 %v41
  %v250 = vunpack.c.l.b16 %v42
  %v251 = vunpack.c.l.b16 %v43
  %v252 = vunpack.c.l.b16 %v44
  %v253 = vunpack.c.l.b16 %v45
  %v254 = vunpack.c.l.b16 %v46
  %v255 = vunpack.c.l.b16 %v47
  %v256 = vunpack.c.l.b16 %v48
  %v257 = vunpack.c.l.b16 %v49
  %v258 = vunpack.c.l.b16 %v50
  %v259 = vunpack.c.l.b16 %v51
  %v260 = vunpack.c.l.b16 %v52
  %v261 = vunpack.c.l.b16 %v53
  %v262 = vunpack.c.l.b16 %v54
  %v263 = vunpack.c.l.b16 %v55
  %v264 = vunpack.c.l.b16 %v56
  %v265 = vunpack.c.l.b16 %v57
  %v266 = vunpack.c.l.b16 %v58
  %v267 = vunpack.c.l.b16 %v59
  %v268 = vunpack.c.l.b16 %v60
  %v269 = vunpack.c.l.b16 %v61
  %v270 = vunpack.c.l.b16 %v62
  %v271 = vunpack.c.l.b16 %v63
  %v272 = vunpack.c.l.b16 %v64
  %v273 = vunpack.c.l.b16 %v65
  %v274 = vunpack.c.l.b16 %v66
  %v275 = vunpack.c.l.b16 %v67
  %v276 = vunpack.c.l.b16 %v68
  %v277 = vunpack.c.l.b16 %v69
  %v278 = vunpack.c.l.b16 %v70
  %v279 = vunpack.c.l.b16 %v71
  %v280 = vunpack.c.l.b16 %v72
  %v281 = vunpack.c.l.b16 %v73
  %v282 = vunpack.c.l.b16 %v74
  %v283 = vunpack.c.l.b16 %v75
  %v284 = vunpack.c.l.b16 %v76
  %v285 = vunpack.c.l.b16 %v77
  %v286 = vunpack.c.l.b16 %v78
  %v287 = vunpack.c.l.b16 %v79
  %v288 = vunpack.c.l.b16 %v80
  %v289 = vunpack.c.l.b16 %v81
  %v290 = vunpack.c.l.b16 %v82
  %v291 = vunpack.c.l.b16 %v83
  %v292 = vunpack.c.l.b16 %v84
  %v293 = vunpack.c.l.b16 %v85
  %v294 = vunpack.c.l.b16 %v86
  %v295 = vunpack.c.l.b16 %v87
  %v296 = vunpack.c.l.b16 %v88
  %v297 = vunpack.c.l.b16 %v89
  %v298 = vunpack.c.l.b16 %v90
  %v299 = vunpack.c.l.b16 %v91
  %v300 = vunpack.c.l.b16 %v92
  %v301 = vunpack.c.l.b16 %v93
  %v302 = vunpack.c.l.b16 %v94
  %v303 = vunpack.c.l.b16 %v95
  %v304 = vunpack.c.l.b16 %v96
  %v305 = vunpack.c.l.b16 %v97
  %v306 = vpack.c.b16 %v243, %v242
  %v307 = vpack.c.b16 %v245, %v244
  %v308 = vpack.c.b16 %v247, %v246
  %v309 = vpack.c.b16 %v249, %v248
  %v310 = vpack.c.b16 %v251, %v250
  %v311 = vpack.c.b16 %v253, %v252
  %v312 = vpack.c.b16 %v255, %v254
  %v313 = vpack.c.b16 %v257, %v256
  %v314 = vpack.c.b16 %v259, %v258
  %v315 = vpack.c.b16 %v261, %v260
  %v316 = vpack.c.b16 %v263, %v262
  %v317 = vpack.c.b16 %v265, %v264
  %v318 = vpack.c.b16 %v267, %v266
  %v319 = vpack.c.b16 %v269, %v268
  %v320 = vpack.c.b16 %v271, %v270
  %v321 = vpack.c.b16 %v273, %v272
  %v322 = vpack.c.b16 %v275, %v274
  %v323 = vpack.c.b16 %v277, %v276
  %v324 = vpack.c.b16 %v279, %v278
  %v325 = vpack.c.b16 %v281, %v280
  %v326 = vpack.c.b16 %v283, %v282
  %v327 = vpack.c.b16 %v285, %v284
  %v328 = vpack.c.b16 %v287, %v286
  %v329 = vpack.c.b16 %v289, %v288
  %v330 = vpack.c.b16 %v291, %v290
  %v331 = vpack.c.b16 %v293, %v292
  %v332 = vpack.c.b16 %v295, %v294
  %v333 = vpack.c.b16 %v297, %v296
  %v334 = vpack.c.b16 %v299, %v298
  %v335 = vpack.c.b16 %v301, %v300
  %v336 = vpack.c.b16 %v303, %v302
  %v337 = vpack.c.b16 %v305, %v304
  %370 = vmatprep.subr.bf16.mxu0 0
  %371 = vmatpush1.bf16.msra.mxu0 %v306
  %372 = vmatprep.subr.bf16.mxu0 0
  %373 = vmatpush1.bf16.msra.mxu0 %v307
  %374 = vmatprep.subr.bf16.mxu0 0
  %375 = vmatpush1.bf16.msra.mxu0 %v308
  %376 = vmatprep.subr.bf16.mxu0 0
  %377 = vmatpush1.bf16.msra.mxu0 %v309
  %378 = vmatprep.subr.bf16.mxu0 0
  %379 = vmatpush1.bf16.msra.mxu0 %v310
  %380 = vmatprep.subr.bf16.mxu0 0
  %381 = vmatpush1.bf16.msra.mxu0 %v311
  %382 = vmatprep.subr.bf16.mxu0 0
  %383 = vmatpush1.bf16.msra.mxu0 %v312
  %384 = vmatprep.subr.bf16.mxu0 0
  %385 = vmatpush1.bf16.msra.mxu0 %v313
  %386 = vmatprep.subr.bf16.mxu0 0
  %387 = vmatpush1.bf16.msra.mxu0 %v314
  %388 = vmatprep.subr.bf16.mxu0 0
  %389 = vmatpush1.bf16.msra.mxu0 %v315
  %390 = vmatprep.subr.bf16.mxu0 0
  %391 = vmatpush1.bf16.msra.mxu0 %v316
  %392 = vmatprep.subr.bf16.mxu0 0
  %393 = vmatpush1.bf16.msra.mxu0 %v317
  %394 = vmatprep.subr.bf16.mxu0 0
  %395 = vmatpush1.bf16.msra.mxu0 %v318
  %396 = vmatprep.subr.bf16.mxu0 0
  %397 = vmatpush1.bf16.msra.mxu0 %v319
  %398 = vmatprep.subr.bf16.mxu0 0
  %399 = vmatpush1.bf16.msra.mxu0 %v320
  %400 = vmatprep.subr.bf16.mxu0 0
  %401 = vmatpush1.bf16.msra.mxu0 %v321
  %402 = vmatprep.mubr.bf16.mxu0 %v147
  %403 = vmatmul.mubr.bf16.gmra.mrb[0].mxu0 %v146
  %v404 = vpop.f32.mrb[0].mxu0
  %v405 = vadd.f32 0.0, %v404
  %v406 = vpop.f32.mrb[0].mxu0
  %v407 = vpop.f32.mrb[0].mxu0
  %v408 = vadd.f32 0.0, %v407
  %v409 = vpop.f32.mrb[0].mxu0
  %410 = vmatprep.mubr.bf16.mxu0 %v151
  %411 = vmatmul.mubr.bf16.gmra.mrb[0].mxu0 %v150
  %v412 = vpop.f32.mrb[0].mxu0
  %v413 = vadd.f32 0.0, %v412
  %v414 = vpop.f32.mrb[0].mxu0
  %v415 = vpop.f32.mrb[0].mxu0
  %v416 = vadd.f32 0.0, %v415
  %v417 = vpop.f32.mrb[0].mxu0
  %418 = vmatprep.mubr.bf16.mxu0 %v155
  %419 = vmatmul.mubr.bf16.gmra.mrb[0].mxu0 %v154
  %v420 = vpop.f32.mrb[0].mxu0
  %v421 = vadd.f32 0.0, %v420
  %v422 = vpop.f32.mrb[0].mxu0
  %v423 = vpop.f32.mrb[0].mxu0
  %v424 = vadd.f32 0.0, %v423
  %v425 = vpop.f32.mrb[0].mxu0
  %426 = vmatprep.mubr.bf16.mxu0 %v159
  %427 = vmatmul.mubr.bf16.gmra.mrb[0].mxu0 %v158
  %v428 = vpop.f32.mrb[0].mxu0
  %v429 = vadd.f32 0.0, %v428
  %v430 = vpop.f32.mrb[0].mxu0
  %v431 = vpop.f32.mrb[0].mxu0
  %v432 = vadd.f32 0.0, %v431
  %v433 = vpop.f32.mrb[0].mxu0
  %434 = vdwg.mxu0
  %435 = vmatprep.subr.bf16.mxu0 0
  %436 = vmatpush1.bf16.msra.mxu0 %v322
  %437 = vmatprep.subr.bf16.mxu0 0
  %438 = vmatpush1.bf16.msra.mxu0 %v323
  %439 = vmatprep.subr.bf16.mxu0 0
  %440 = vmatpush1.bf16.msra.mxu0 %v324
  %441 = vmatprep.subr.bf16.mxu0 0
  %442 = vmatpush1.bf16.msra.mxu0 %v325
  %443 = vmatprep.subr.bf16.mxu0 0
  %444 = vmatpush1.bf16.msra.mxu0 %v326
  %445 = vmatprep.subr.bf16.mxu0 0
  %446 = vmatpush1.bf16.msra.mxu0 %v327
  %447 = vmatprep.subr.bf16.mxu0 0
  %448 = vmatpush1.bf16.msra.mxu0 %v328
  %449 = vmatprep.subr.bf16.mxu0 0
  %450 = vmatpush1.bf16.msra.mxu0 %v329
  %451 = vmatprep.subr.bf16.mxu0 0
  %452 = vmatpush1.bf16.msra.mxu0 %v330
  %453 = vmatprep.subr.bf16.mxu0 0
  %454 = vmatpush1.bf16.msra.mxu0 %v331
  %455 = vmatprep.subr.bf16.mxu0 0
  %456 = vmatpush1.bf16.msra.mxu0 %v332
  %457 = vmatprep.subr.bf16.mxu0 0
  %458 = vmatpush1.bf16.msra.mxu0 %v333
  %459 = vmatprep.subr.bf16.mxu0 0
  %460 = vmatpush1.bf16.msra.mxu0 %v334
  %461 = vmatprep.subr.bf16.mxu0 0
  %462 = vmatpush1.bf16.msra.mxu0 %v335
  %463 = vmatprep.subr.bf16.mxu0 0
  %464 = vmatpush1.bf16.msra.mxu0 %v336
  %465 = vmatprep.subr.bf16.mxu0 0
  %466 = vmatpush1.bf16.msra.mxu0 %v337
  %467 = vmatprep.mubr.bf16.mxu0 %v149
  %468 = vmatmul.mubr.bf16.gmra.mrb[0].mxu0 %v148
  %v469 = vpop.f32.mrb[0].mxu0
  %v470 = vadd.f32 %v405, %v469
  %v471 = vpop.f32.mrb[0].mxu0
  %v472 = vpop.f32.mrb[0].mxu0
  %v473 = vadd.f32 %v408, %v472
  %v474 = vpop.f32.mrb[0].mxu0
  %475 = vmatprep.mubr.bf16.mxu0 %v153
  %476 = vmatmul.mubr.bf16.gmra.mrb[0].mxu0 %v152
  %v477 = vpop.f32.mrb[0].mxu0
  %v478 = vadd.f32 %v413, %v477
  %v479 = vpop.f32.mrb[0].mxu0
  %v480 = vpop.f32.mrb[0].mxu0
  %v481 = vadd.f32 %v416, %v480
  %v482 = vpop.f32.mrb[0].mxu0
  %483 = vmatprep.mubr.bf16.mxu0 %v157
  %484 = vmatmul.mubr.bf16.gmra.mrb[0].mxu0 %v156
  %v485 = vpop.f32.mrb[0].mxu0
  %v486 = vadd.f32 %v421, %v485
  %v487 = vpop.f32.mrb[0].mxu0
  %v488 = vpop.f32.mrb[0].mxu0
  %v489 = vadd.f32 %v424, %v488
  %v490 = vpop.f32.mrb[0].mxu0
  %491 = vmatprep.mubr.bf16.mxu0 %v161
  %492 = vmatmul.mubr.bf16.gmra.mrb[0].mxu0 %v160
  %v493 = vpop.f32.mrb[0].mxu0
  %v494 = vadd.f32 %v429, %v493
  %v495 = vpop.f32.mrb[0].mxu0
  %v496 = vpop.f32.mrb[0].mxu0
  %v497 = vadd.f32 %v432, %v496
  %v498 = vpop.f32.mrb[0].mxu0
  %499 = vdwg.mxu0
  %vm500 = vcmask 261120
  %v501 = vsel %vm500, %v470, 0.0
  %502 = vadd.xlane.f32.xlu0 %v501
  %v503 = vpop.xlane.xlu0 %502
  %v504 = vsel %vm500, %v473, 0.0
  %505 = vadd.xlane.f32.xlu0 %v504
  %v506 = vpop.xlane.xlu0 %505
  %v507 = vsel %vm500, %v478, 0.0
  %508 = vadd.xlane.f32.xlu0 %v507
  %v509 = vpop.xlane.xlu0 %508
  %v510 = vsel %vm500, %v481, 0.0
  %511 = vadd.xlane.f32.xlu0 %v510
  %v512 = vpop.xlane.xlu0 %511
  %v513 = vsel %vm500, %v486, 0.0
  %514 = vadd.xlane.f32.xlu0 %v513
  %v515 = vpop.xlane.xlu0 %514
  %v516 = vsel %vm500, %v489, 0.0
  %517 = vadd.xlane.f32.xlu0 %v516
  %v518 = vpop.xlane.xlu0 %517
  %v519 = vsel %vm500, %v494, 0.0
  %520 = vadd.xlane.f32.xlu0 %v519
  %v521 = vpop.xlane.xlu0 %520
  %v522 = vsel %vm500, %v497, 0.0
  %523 = vadd.xlane.f32.xlu0 %v522
  %v524 = vpop.xlane.xlu0 %523
  %v525 = vmul.f32 %v503, 0.03125
  %v526 = vmul.f32 %v506, 0.03125
  %v527 = vmul.f32 %v509, 0.03125
  %v528 = vmul.f32 %v512, 0.03125
  %v529 = vmul.f32 %v515, 0.03125
  %v530 = vmul.f32 %v518, 0.03125
  %v531 = vmul.f32 %v521, 0.03125
  %v532 = vmul.f32 %v524, 0.03125
  %v533 = vsub.f32 %v470, %v525
  %v534 = vsub.f32 %v473, %v526
  %v535 = vsub.f32 %v478, %v527
  %v536 = vsub.f32 %v481, %v528
  %v537 = vsub.f32 %v486, %v529
  %v538 = vsub.f32 %v489, %v530
  %v539 = vsub.f32 %v494, %v531
  %v540 = vsub.f32 %v497, %v532
  %v541 = vmul.f32 %v533, %v533
  %v542 = vmul.f32 %v534, %v534
  %v543 = vmul.f32 %v535, %v535
  %v544 = vmul.f32 %v536, %v536
  %v545 = vmul.f32 %v537, %v537
  %v546 = vmul.f32 %v538, %v538
  %v547 = vmul.f32 %v539, %v539
  %v548 = vmul.f32 %v540, %v540
  %v549 = vsel %vm500, %v541, 0.0
  %550 = vadd.xlane.f32.xlu0 %v549
  %v551 = vpop.xlane.xlu0 %550
  %v552 = vsel %vm500, %v542, 0.0
  %553 = vadd.xlane.f32.xlu0 %v552
  %v554 = vpop.xlane.xlu0 %553
  %v555 = vsel %vm500, %v543, 0.0
  %556 = vadd.xlane.f32.xlu0 %v555
  %v557 = vpop.xlane.xlu0 %556
  %v558 = vsel %vm500, %v544, 0.0
  %559 = vadd.xlane.f32.xlu0 %v558
  %v560 = vpop.xlane.xlu0 %559
  %v561 = vsel %vm500, %v545, 0.0
  %562 = vadd.xlane.f32.xlu0 %v561
  %v563 = vpop.xlane.xlu0 %562
  %v564 = vsel %vm500, %v546, 0.0
  %565 = vadd.xlane.f32.xlu0 %v564
  %v566 = vpop.xlane.xlu0 %565
  %v567 = vsel %vm500, %v547, 0.0
  %568 = vadd.xlane.f32.xlu0 %v567
  %v569 = vpop.xlane.xlu0 %568
  %v570 = vsel %vm500, %v548, 0.0
  %571 = vadd.xlane.f32.xlu0 %v570
  %v572 = vpop.xlane.xlu0 %571
  %v573 = vmul.f32 %v551, 0.03125
  %v574 = vmul.f32 %v554, 0.03125
  %v575 = vmul.f32 %v557, 0.03125
  %v576 = vmul.f32 %v560, 0.03125
  %v577 = vmul.f32 %v563, 0.03125
  %v578 = vmul.f32 %v566, 0.03125
  %v579 = vmul.f32 %v569, 0.03125
  %v580 = vmul.f32 %v572, 0.03125
  %v581 = vld [vmem:[%s2] sm:$0xff]
  %v582 = vld [vmem:[%s2 + $0x8] sm:$0xff]
  %v583 = vld [vmem:[%s2 + $0x10] sm:$0xff]
  %v584 = vld [vmem:[%s2 + $0x18] sm:$0xff]
  %v585 = vld [vmem:[%s2 + $0x20] sm:$0xff]
  %v586 = vld [vmem:[%s2 + $0x28] sm:$0xff]
  %v587 = vld [vmem:[%s2 + $0x30] sm:$0xff]
  %v588 = vld [vmem:[%s2 + $0x38] sm:$0xff]
  %v589 = vadd.f32 %v573, 1e-05
  %v590 = vadd.f32 %v574, 1e-05
  %v591 = vadd.f32 %v575, 1e-05
  %v592 = vadd.f32 %v576, 1e-05
  %v593 = vadd.f32 %v577, 1e-05
  %v594 = vadd.f32 %v578, 1e-05
  %v595 = vadd.f32 %v579, 1e-05
  %v596 = vadd.f32 %v580, 1e-05
  %v597 = vrsqrt.pop %v589
  %v598 = vrsqrt.pop %v590
  %v599 = vrsqrt.pop %v591
  %v600 = vrsqrt.pop %v592
  %v601 = vrsqrt.pop %v593
  %v602 = vrsqrt.pop %v594
  %v603 = vrsqrt.pop %v595
  %v604 = vrsqrt.pop %v596
  %v605 = vmul.f32 %v581, %v597
  %v606 = vmul.f32 %v582, %v598
  %v607 = vmul.f32 %v583, %v599
  %v608 = vmul.f32 %v584, %v600
  %v609 = vmul.f32 %v585, %v601
  %v610 = vmul.f32 %v586, %v602
  %v611 = vmul.f32 %v587, %v603
  %v612 = vmul.f32 %v588, %v604
  %614 = vset.pattern.permute.xlu0 0
  %615 = vperm.xlu0 %614, %v605
  %v616 = vpop.permute.xlu0 %615
  %619 = vset.pattern.permute.xlu0 0
  %620 = vperm.xlu0 %619, %v606
  %v621 = vpop.permute.xlu0 %620
  %624 = vset.pattern.permute.xlu0 0
  %625 = vperm.xlu0 %624, %v607
  %v626 = vpop.permute.xlu0 %625
  %629 = vset.pattern.permute.xlu0 0
  %630 = vperm.xlu0 %629, %v608
  %v631 = vpop.permute.xlu0 %630
  %634 = vset.pattern.permute.xlu0 0
  %635 = vperm.xlu0 %634, %v609
  %v636 = vpop.permute.xlu0 %635
  %639 = vset.pattern.permute.xlu0 0
  %640 = vperm.xlu0 %639, %v610
  %v641 = vpop.permute.xlu0 %640
  %644 = vset.pattern.permute.xlu0 0
  %645 = vperm.xlu0 %644, %v611
  %v646 = vpop.permute.xlu0 %645
  %649 = vset.pattern.permute.xlu0 0
  %650 = vperm.xlu0 %649, %v612
  %v651 = vpop.permute.xlu0 %650
  %v653 = vmul.f32 %v533, %v616
  %v654 = vmul.f32 %v534, %v621
  %v655 = vmul.f32 %v535, %v626
  %v656 = vmul.f32 %v536, %v631
  %v657 = vmul.f32 %v537, %v636
  %v658 = vmul.f32 %v538, %v641
  %v659 = vmul.f32 %v539, %v646
  %v660 = vmul.f32 %v540, %v651
  %v661 = vld [vmem:[%s3] sm:$0xff]
  %v662 = vld [vmem:[%s3 + $0x8] sm:$0xff]
  %v663 = vld [vmem:[%s3 + $0x10] sm:$0xff]
  %v664 = vld [vmem:[%s3 + $0x18] sm:$0xff]
  %v665 = vld [vmem:[%s3 + $0x20] sm:$0xff]
  %v666 = vld [vmem:[%s3 + $0x28] sm:$0xff]
  %v667 = vld [vmem:[%s3 + $0x30] sm:$0xff]
  %v668 = vld [vmem:[%s3 + $0x38] sm:$0xff]
  %670 = vset.pattern.permute.xlu0 0
  %671 = vperm.xlu0 %670, %v661
  %v672 = vpop.permute.xlu0 %671
  %675 = vset.pattern.permute.xlu0 0
  %676 = vperm.xlu0 %675, %v662
  %v677 = vpop.permute.xlu0 %676
  %680 = vset.pattern.permute.xlu0 0
  %681 = vperm.xlu0 %680, %v663
  %v682 = vpop.permute.xlu0 %681
  %685 = vset.pattern.permute.xlu0 0
  %686 = vperm.xlu0 %685, %v664
  %v687 = vpop.permute.xlu0 %686
  %690 = vset.pattern.permute.xlu0 0
  %691 = vperm.xlu0 %690, %v665
  %v692 = vpop.permute.xlu0 %691
  %695 = vset.pattern.permute.xlu0 0
  %696 = vperm.xlu0 %695, %v666
  %v697 = vpop.permute.xlu0 %696
  %700 = vset.pattern.permute.xlu0 0
  %701 = vperm.xlu0 %700, %v667
  %v702 = vpop.permute.xlu0 %701
  %705 = vset.pattern.permute.xlu0 0
  %706 = vperm.xlu0 %705, %v668
  %v707 = vpop.permute.xlu0 %706
  %v709 = vadd.f32 %v653, %v672
  %v710 = vadd.f32 %v654, %v677
  %v711 = vadd.f32 %v655, %v682
  %v712 = vadd.f32 %v656, %v687
  %v713 = vadd.f32 %v657, %v692
  %v714 = vadd.f32 %v658, %v697
  %v715 = vadd.f32 %v659, %v702
  %v716 = vadd.f32 %v660, %v707
  %v717 = vmul.f32 %v709, 0.2
  %v718 = vmul.f32 %v710, 0.2
  %v719 = vmul.f32 %v711, 0.2
  %v720 = vmul.f32 %v712, 0.2
  %v721 = vmul.f32 %v713, 0.2
  %v722 = vmul.f32 %v714, 0.2
  %v723 = vmul.f32 %v715, 0.2
  %v724 = vmul.f32 %v716, 0.2
  %v725 = vmax.f32 %v709, %v717
  %v726 = vmax.f32 %v710, %v718
  %v727 = vmax.f32 %v711, %v719
  %v728 = vmax.f32 %v712, %v720
  %v729 = vmax.f32 %v713, %v721
  %v730 = vmax.f32 %v714, %v722
  %v731 = vmax.f32 %v715, %v723
  %v732 = vmax.f32 %v716, %v724
  %v733 = vpack.c.bf16 %v726, %v725
  %v734 = vpack.c.bf16 %v728, %v727
  %v735 = vpack.c.bf16 %v730, %v729
  %v736 = vpack.c.bf16 %v732, %v731
  %v741 = vunpack.c.l.b16 %v733
  %v742 = vunpack.c.h.b16 %v733
  %v743 = vunpack.c.l.b16 %v734
  %v744 = vunpack.c.h.b16 %v734
  %v745 = vunpack.c.l.b16 %v735
  %v746 = vunpack.c.h.b16 %v735
  %v747 = vunpack.c.l.b16 %v736
  %v748 = vunpack.c.h.b16 %v736
  %v749 = vpack.c.b16 %v741, %v741
  %v750 = vpack.c.b16 %v742, %v742
  %v751 = vpack.c.b16 %v743, %v743
  %v752 = vpack.c.b16 %v744, %v744
  %v753 = vpack.c.b16 %v745, %v745
  %v754 = vpack.c.b16 %v746, %v746
  %v755 = vpack.c.b16 %v747, %v747
  %v756 = vpack.c.b16 %v748, %v748
  %vm765 = vcmask 257024
  %766 = vst.msk [vmem:[%s4] sm:$0xf] %vm765, %v749
  %767 = vst.msk [vmem:[%s4 + $0x4] sm:$0xf] %vm765, %v750
  %768 = vst.msk [vmem:[%s4 + $0x8] sm:$0xf] %vm765, %v751
  %769 = vst.msk [vmem:[%s4 + $0xc] sm:$0xf] %vm765, %v752
  %770 = vst.msk [vmem:[%s4 + $0x10] sm:$0xf] %vm765, %v753
  %771 = vst.msk [vmem:[%s4 + $0x14] sm:$0xf] %vm765, %v754
  %772 = vst.msk [vmem:[%s4 + $0x18] sm:$0xf] %vm765, %v755
  %773 = vst.msk [vmem:[%s4 + $0x1c] sm:$0xf] %vm765, %v756
  // Predicated region
  $region18: #{discriminator_forward.7} parent=0 // pred_check
    _
  $region19: #{discriminator_forward.7} parent=0 // pred_check_branch
    %775 = sbr.rel (0) target = $region21
  $region20: #{discriminator_forward.7} parent=0 // pred_region
    _
  $region21: #{discriminator_forward.7} parent=0 // pred_fallthru
    _
  // Predicated region
  $region22: #{discriminator_forward.7} parent=0 // pred_check
    _
  $region23: #{discriminator_forward.7} parent=0 // pred_check_branch
    %777 = sbr.rel (0) target = $region25
  $region24: #{discriminator_forward.7} parent=0 // pred_region
    _
  $region25: #{discriminator_forward.7} parent=0 // pred_fallthru
    _

</llo_original>
